<compile_context>
chip_gen: v7x
topology: tpu7x:2x2x1
jax: 0.10.0
libtpu: 0.0.40
codegen_flags: <defaults>
</compile_context>

<pallas_src>
import numpy as np
import jax
import jax.numpy as jnp
from jax.experimental import pallas as pl
from jax.experimental.pallas import tpu as pltpu


# ----------------------------------------------------------------------------
# Fused Pallas kernel: whole encoder (all layers, all timesteps in the grid).
# ----------------------------------------------------------------------------
def make_encoder_kernel(num_layers, rnn_units, num_matrices, layer_in_dims,
                        lane_pad):
    U, K, L = rnn_units, num_matrices, num_layers

    def kernel(*refs):
        # refs = [x_t, h0, TkB] + [Wf_l, bf_l, Wcs_l] * L   (inputs)
        #        + [hstack]                                  (output)
        #        + [h_scr, zin, zslab]                       (scratch)
        x_ref, h0_ref, tkb_ref = refs[0], refs[1], refs[2]
        wrefs = refs[3:3 + 3 * L]
        out_ref = refs[3 + 3 * L]
        h_scr, zin_ref, z_ref = refs[3 + 3 * L + 1:]

        t = pl.program_id(0)
        NB = zin_ref.shape[0]                      # num_nodes * batch (rows (n,b))

        @pl.when(t == 0)
        def _init():
            # Load the provided initial hidden state; zero the padded assembly
            # buffer ONCE (covers uninitialised-VMEM NaNs — afterwards its
            # padded/stale columns only multiply exactly-zero weight rows).
            h_scr[...] = h0_ref[...]
            zin_ref[...] = jnp.zeros_like(zin_ref)

        tkb = tkb_ref[...]                         # (K*NB, NB) diffusion operator
        xl = x_ref[0]                              # (NB, input_dim), rows (n,b)

        for layer in range(L):                     # static unroll (L == 2)
            din = layer_in_dims[layer]
            c = din + U
            wf = wrefs[3 * layer + 0][...]         # (K*lane_pad, 3U)  zero-padded
            bf = wrefs[3 * layer + 1][...]         # (1, 3U)  = [b_ru | b_c]
            wcs = wrefs[3 * layer + 2][...]        # (K*U, U)  w_c state rows
            h = h_scr[layer]                       # (NB, U)   previous-step state

            # ---- assemble [x | h | pad] once (diffusion is columnwise-linear) --
            zin_ref[:, 0:din] = xl
            zin_ref[:, din:c] = h

            # ---- all K Chebyshev diffusion orders with ONE matmul --------------
            d = jnp.dot(tkb, zin_ref[...],
                        preferred_element_type=jnp.float32)   # (K*NB, lane_pad)

            # ---- lane-aligned slab: full-width 128-lane stores ------------------
            for k in range(K):
                z_ref[:, k * lane_pad:(k + 1) * lane_pad] = \
                    d[k * NB:(k + 1) * NB, :]

            # ---- fused gate + candidate-input matmul ----------------------------
            g = jnp.dot(z_ref[...], wf,
                        preferred_element_type=jnp.float32) + bf      # (NB, 3U)
            r = jax.nn.sigmoid(g[:, 0:U])
            u = jax.nn.sigmoid(g[:, U:2 * U])
            cand = g[:, 2 * U:3 * U]               # input-feature part of w_c

            # ---- candidate state correction: diffuse r*h, apply w_c state rows --
            drh = jnp.dot(tkb, r * h,
                          preferred_element_type=jnp.float32)         # (K*NB, U)
            for k in range(K):
                cand = cand + jnp.dot(drh[k * NB:(k + 1) * NB, :],
                                      wcs[k * U:(k + 1) * U, :],
                                      preferred_element_type=jnp.float32)
            cand = jnp.tanh(cand)

            # ---- GRU state update -----------------------------------------------
            hnew = u * h + (1.0 - u) * cand        # (NB, U)
            h_scr[layer] = hnew
            xl = hnew                              # input of next layer

        @pl.when(t == pl.num_programs(0) - 1)
        def _finalize():
            out_ref[...] = h_scr[...]

    return kernel


# ----------------------------------------------------------------------------
# One-time host-side preprocessing (graph + parameter re-layout).
# ----------------------------------------------------------------------------
def calculate_scaled_laplacian(adj, lambda_max=None):
    adj = np.maximum(adj, adj.T)
    d = adj.sum(axis=1)
    d_inv_sqrt = np.zeros_like(d)
    np.power(d, -0.5, out=d_inv_sqrt, where=d > 0)
    n = adj.shape[0]
    lap = np.eye(n) - (adj * d_inv_sqrt[:, None]) * d_inv_sqrt[None, :]
    if lambda_max is None:
        lambda_max = float(np.linalg.eigvalsh(lap).max())
    return ((2.0 / lambda_max) * lap - np.eye(n)).astype(np.float32)


def prepare_diffusion_operator(support, num_matrices, batch_size):
    """[T0(L)⊗I_B ; T1(L)⊗I_B ; ...] : (K*N*B, N*B), rows/cols ordered (node, batch)."""
    lap = np.asarray(support, dtype=np.float64)
    n = lap.shape[0]
    mats = [np.eye(n)]
    if num_matrices > 1:
        mats.append(lap)
        for _ in range(2, num_matrices):
            mats.append(2.0 * (lap @ mats[-1]) - mats[-2])
    eye_b = np.eye(batch_size)
    tkb = np.concatenate([np.kron(m, eye_b) for m in mats], axis=0)
    return jnp.asarray(tkb.astype(np.float32))


def make_params(key, num_layers, num_nodes, input_dim, rnn_units, num_matrices):
    """Per-layer gconv params in the original PyTorch layout:
       W_ru: ((Din+U)*K, 2U), b_ru: (2U,)=1.0 ; W_c: ((Din+U)*K, U), b_c: (U,)=0.0"""
    params = []
    din = input_dim
    for _ in range(num_layers):
        c = din + rnn_units
        key, k1, k2 = jax.random.split(key, 3)
        w_ru = 0.1 * jax.random.normal(k1, (c * num_matrices, 2 * rnn_units),
                                       jnp.float32)
        b_ru = jnp.full((2 * rnn_units,), 1.0, jnp.float32)   # bias_start=1.0
        w_c = 0.1 * jax.random.normal(k2, (c * num_matrices, rnn_units),
                                      jnp.float32)
        b_c = jnp.zeros((rnn_units,), jnp.float32)            # bias_start=0.0
        params.append((din, w_ru, b_ru, w_c, b_c))
        din = rnn_units
    return params


def prepare_kernel_params(params, rnn_units, num_matrices, lane_pad=128):
    """One-time re-layout: PyTorch row feat*K + k  ->  k-major, lane-padded.
       Per layer: Wf (K*lane_pad, 3U) = [w_ru | w_c-input-rows] (rest zero),
                  bf (1, 3U) = [b_ru | b_c],  Wcs (K*U, U) = w_c state rows."""
    U, K = rnn_units, num_matrices
    flat = []
    for din, w_ru, b_ru, w_c, b_c in params:
        c = din + U
        assert c <= lane_pad
        w_ru_k = np.transpose(np.asarray(w_ru).reshape(c, K, 2 * U), (1, 0, 2))
        w_c_k = np.transpose(np.asarray(w_c).reshape(c, K, U), (1, 0, 2))
        wf = np.zeros((K, lane_pad, 3 * U), np.float32)
        wf[:, :c, :2 * U] = w_ru_k
        wf[:, :din, 2 * U:] = w_c_k[:, :din, :]
        bf = np.concatenate([np.asarray(b_ru), np.asarray(b_c)]).reshape(1, 3 * U)
        wcs = np.ascontiguousarray(w_c_k[:, din:, :]).reshape(K * U, U)
        flat += [jnp.asarray(wf.reshape(K * lane_pad, 3 * U)),
                 jnp.asarray(bf.astype(np.float32)),
                 jnp.asarray(wcs.astype(np.float32))]
    return tuple(flat)


# ----------------------------------------------------------------------------
# Wrapper: single-step forward (module semantics) + whole-sequence encoder.
# ----------------------------------------------------------------------------
def make_encoder_forward(support, params, num_layers, num_nodes, input_dim,
                         rnn_units, max_diffusion_step, batch_size,
                         lane_pad=128):
    N, U, L = num_nodes, rnn_units, num_layers
    K = max_diffusion_step + 1                     # single 'laplacian' support
    layer_dims = [input_dim] + [rnn_units] * (num_layers - 1)
    assert max(layer_dims) + U <= lane_pad

    tkb = prepare_diffusion_operator(support, K, batch_size)   # (K*N*B, N*B)
    flat_params = prepare_kernel_params(params, U, K, lane_pad)
    kernel = make_encoder_kernel(L, U, K, layer_dims, lane_pad)

    @jax.jit
    def _run(x_seq, hidden0, tkb_op, *kparams):
        # x_seq: (T, B, N*input_dim), hidden0: (L, B, N*U)
        T, B = x_seq.shape[0], x_seq.shape[1]
        NB = N * B
        x_nb = (x_seq.reshape(T, B, N, input_dim).transpose(0, 2, 1, 3)
                .reshape(T, NB, input_dim).astype(jnp.float32))
        h_nb = (hidden0.reshape(L, B, N, U).transpose(0, 2, 1, 3)
                .reshape(L, NB, U).astype(jnp.float32))

        in_specs = [
            pl.BlockSpec((1, NB, input_dim), lambda t: (t, 0, 0)),   # per-step x
            pl.BlockSpec((L, NB, U), lambda t: (0, 0, 0)),           # h0 (once)
            pl.BlockSpec((K * NB, NB), lambda t: (0, 0)),            # TkB (once)
        ]
        for _ in range(L):                                           # weights (once)
            in_specs += [
                pl.BlockSpec((K * lane_pad, 3 * U), lambda t: (0, 0)),
                pl.BlockSpec((1, 3 * U), lambda t: (0, 0)),
                pl.BlockSpec((K * U, U), lambda t: (0, 0)),
            ]

        hstack = pl.pallas_call(
            kernel,
            out_shape=jax.ShapeDtypeStruct((L, NB, U), jnp.float32),
            grid_spec=pltpu.PrefetchScalarGridSpec(
                num_scalar_prefetch=0,
                grid=(T,),
                in_specs=in_specs,
                out_specs=pl.BlockSpec((L, NB, U), lambda t: (0, 0, 0)),
                scratch_shapes=[
                    pltpu.VMEM((L, NB, U), jnp.float32),            # recurrent h
                    pltpu.VMEM((NB, lane_pad), jnp.float32),        # [x|h|pad]
                    pltpu.VMEM((NB, K * lane_pad), jnp.float32),    # Z slab
                ],
            ),
            compiler_params=pltpu.CompilerParams(
                dimension_semantics=("arbitrary",)),
        )(x_nb, h_nb, tkb_op, *kparams)

        # back to module layout (tiny wrapper-side relayout, outside the kernel)
        h_out = (hstack.reshape(L, N, B, U).transpose(0, 2, 1, 3)
                 .reshape(L, B, N * U))
        return h_out[L - 1], h_out

    def forward(inputs, hidden_state=None):
        """EncoderModel.forward: inputs (B, N*input_dim) -> (output, hidden_stack)."""
        B = inputs.shape[0]
        if hidden_state is None:
            hidden_state = jnp.zeros((L, B, N * U), jnp.float32)
        return _run(inputs[None], hidden_state, tkb, *flat_params)

    def encode_sequence(x_seq, hidden_state=None):
        """Roll the encoder over a whole sequence inside ONE kernel (grid over T)."""
        B = x_seq.shape[1]
        if hidden_state is None:
            hidden_state = jnp.zeros((L, B, N * U), jnp.float32)
        return _run(x_seq, hidden_state, tkb, *flat_params)

    return forward, encode_sequence


# ----------------------------------------------------------------------------
# Pure-JAX reference (mirrors the PyTorch DCGRUCell exactly) for validation.
# ----------------------------------------------------------------------------
def gconv_ref(L, x, state, w, bias, out_dim, max_diff, num_nodes):
    B = x.shape[0]
    x = x.reshape(B, num_nodes, -1)
    state = state.reshape(B, num_nodes, -1)
    xs = jnp.concatenate([x, state], axis=2)
    c = xs.shape[2]
    x0 = jnp.transpose(xs, (1, 2, 0)).reshape(num_nodes, c * B)
    mats = [x0]
    if max_diff > 0:
        x1 = L @ x0
        mats.append(x1)
        for _ in range(2, max_diff + 1):
            x2 = 2.0 * (L @ x1) - x0
            mats.append(x2)
            x1, x0 = x2, x1
    k = len(mats)
    xstk = jnp.stack(mats, 0).reshape(k, num_nodes, c, B)
    xstk = jnp.transpose(xstk, (3, 1, 2, 0)).reshape(B * num_nodes, c * k)
    out = xstk @ w + bias
    return out.reshape(B, num_nodes * out_dim)


def encoder_ref(inputs, params, L, num_nodes, rnn_units, max_diff, num_layers,
                hidden_state=None):
    B = inputs.shape[0]
    hsz = num_nodes * rnn_units
    if hidden_state is None:
        hidden_state = jnp.zeros((num_layers, B, hsz), jnp.float32)
    hs, output = [], inputs
    for layer in range(num_layers):
        _, w_ru, b_ru, w_c, b_c = params[layer]
        hx = hidden_state[layer]
        value = jax.nn.sigmoid(gconv_ref(L, output, hx, w_ru, b_ru, 2 * rnn_units,
                                         max_diff, num_nodes))
        value = value.reshape(B, num_nodes, 2 * rnn_units)
        r = value[..., :rnn_units].reshape(B, hsz)
        u = value[..., rnn_units:].reshape(B, hsz)
        cand = jnp.tanh(gconv_ref(L, output, r * hx, w_c, b_c, rnn_units,
                                  max_diff, num_nodes))
        hnew = u * hx + (1.0 - u) * cand
        hs.append(hnew)
        output = hnew
    return output, jnp.stack(hs)


# ----------------------------------------------------------------------------
if __name__ == "__main__":
    # EncoderModel hyperparameters (small, consistent with the module)
    num_nodes = 16
    input_dim = 4
    rnn_units = 32
    num_rnn_layers = 2
    max_diffusion_step = 2
    batch_size = 2
    seq_len = 8
    num_matrices = max_diffusion_step + 1          # single 'laplacian' support

    key = jax.random.PRNGKey(0)
    k_adj, k_in, k_seq, k_h, k_par = jax.random.split(key, 5)

    # deterministic synthetic adjacency (non-negative, with self loops)
    adj = np.abs(np.asarray(jax.random.normal(k_adj, (num_nodes, num_nodes),
                                              jnp.float32)))
    adj = adj + np.eye(num_nodes, dtype=np.float32)
    support = calculate_scaled_laplacian(adj)
    support_j = jnp.asarray(support)

    # single-step input (module semantics) and a short sequence
    inputs = jax.random.normal(k_in, (batch_size, num_nodes * input_dim),
                               jnp.float32)
    x_seq = jax.random.normal(k_seq, (seq_len, batch_size,
                                      num_nodes * input_dim), jnp.float32)
    hidden0 = 0.5 * jax.random.normal(
        k_h, (num_rnn_layers, batch_size, num_nodes * rnn_units), jnp.float32)

    params = make_params(k_par, num_rnn_layers, num_nodes, input_dim,
                         rnn_units, num_matrices)

    forward, encode_sequence = make_encoder_forward(
        support, params, num_rnn_layers, num_nodes, input_dim, rnn_units,
        max_diffusion_step, batch_size)

    # --- single EncoderModel.forward step, provided hidden state ------------
    output, hidden = forward(inputs, hidden_state=hidden0)
    jax.block_until_ready((output, hidden))
    out_ref, hid_ref = encoder_ref(inputs, params, support_j, num_nodes,
                                   rnn_units, max_diffusion_step,
                                   num_rnn_layers, hidden0)
    np.testing.assert_allclose(np.asarray(output), np.asarray(out_ref),
                               rtol=2e-3, atol=2e-3)
    np.testing.assert_allclose(np.asarray(hidden), np.asarray(hid_ref),
                               rtol=2e-3, atol=2e-3)
    assert output.shape == (batch_size, num_nodes * rnn_units)
    assert hidden.shape == (num_rnn_layers, batch_size, num_nodes * rnn_units)

    # --- single step, default (zeros) hidden state ---------------------------
    out0, hid0 = forward(inputs)
    out0_ref, hid0_ref = encoder_ref(inputs, params, support_j, num_nodes,
                                     rnn_units, max_diffusion_step,
                                     num_rnn_layers, None)
    np.testing.assert_allclose(np.asarray(hid0), np.asarray(hid0_ref),
                               rtol=2e-3, atol=2e-3)

    # --- whole sequence inside ONE kernel (grid over timesteps) --------------
    out_seq, hid_seq = encode_sequence(x_seq, hidden_state=hidden0)
    jax.block_until_ready((out_seq, hid_seq))
    # must match stepping the single-step kernel T times (state via HBM)
    h_it = hidden0
    out_it = None
    for t in range(seq_len):
        out_it, h_it = forward(x_seq[t], hidden_state=h_it)
    np.testing.assert_allclose(np.asarray(hid_seq), np.asarray(h_it),
                               rtol=1e-5, atol=1e-5)
    np.testing.assert_allclose(np.asarray(out_seq), np.asarray(out_it),
                               rtol=1e-5, atol=1e-5)

    print("KERNEL_OK")
</pallas_src>

<mosaic_0001>
module attributes {stable_mosaic.version = 11 : i64} {
  func.func @kernel(%arg0: i32, %arg1: memref<1x32x4xf32, #tpu.memory_space<vmem>>, %arg2: memref<2x32x32xf32, #tpu.memory_space<vmem>>, %arg3: memref<96x32xf32, #tpu.memory_space<vmem>>, %arg4: memref<384x96xf32, #tpu.memory_space<vmem>>, %arg5: memref<1x96xf32, #tpu.memory_space<vmem>>, %arg6: memref<96x32xf32, #tpu.memory_space<vmem>>, %arg7: memref<384x96xf32, #tpu.memory_space<vmem>>, %arg8: memref<1x96xf32, #tpu.memory_space<vmem>>, %arg9: memref<96x32xf32, #tpu.memory_space<vmem>>, %arg10: memref<2x32x32xf32, #tpu.memory_space<vmem>>, %arg11: memref<2x32x32xf32, #tpu.memory_space<vmem>>, %arg12: memref<32x128xf32, #tpu.memory_space<vmem>>, %arg13: memref<32x384xf32, #tpu.memory_space<vmem>>) attributes {dimension_semantics = [#tpu.dimension_semantics<arbitrary>], iteration_bounds = array<i64: 1>, scalar_prefetch = 0 : i64, scratch_operands = 3 : i64, tpu.core_type = #tpu.core_type<tc>, window_params = [{transform_indices = @transform_0, window_bounds = array<i64: 1, 32, 4>}, {pipeline_mode = #tpu.pipeline_mode<synchronous>, transform_indices = @transform_1, window_bounds = array<i64: 2, 32, 32>}, {pipeline_mode = #tpu.pipeline_mode<synchronous>, transform_indices = @transform_2, window_bounds = array<i64: 96, 32>}, {pipeline_mode = #tpu.pipeline_mode<synchronous>, transform_indices = @transform_3, window_bounds = array<i64: 384, 96>}, {pipeline_mode = #tpu.pipeline_mode<synchronous>, transform_indices = @transform_4, window_bounds = array<i64: 1, 96>}, {pipeline_mode = #tpu.pipeline_mode<synchronous>, transform_indices = @transform_5, window_bounds = array<i64: 96, 32>}, {pipeline_mode = #tpu.pipeline_mode<synchronous>, transform_indices = @transform_6, window_bounds = array<i64: 384, 96>}, {pipeline_mode = #tpu.pipeline_mode<synchronous>, transform_indices = @transform_7, window_bounds = array<i64: 1, 96>}, {pipeline_mode = #tpu.pipeline_mode<synchronous>, transform_indices = @transform_8, window_bounds = array<i64: 96, 32>}, {pipeline_mode = #tpu.pipeline_mode<synchronous>, transform_indices = @transform_9, window_bounds = array<i64: 2, 32, 32>}]} {
    %c0_i32 = arith.constant 0 : i32
    %0 = arith.cmpi eq, %arg0, %c0_i32 : i32
    %1 = arith.extui %0 : i1 to i32
    %c0_i32_0 = arith.constant 0 : i32
    %2 = arith.cmpi ne, %1, %c0_i32_0 : i32
    scf.if %2 {
      %c0_71 = arith.constant 0 : index
      %c0_72 = arith.constant 0 : index
      %c0_73 = arith.constant 0 : index
      %119 = vector.load %arg2[%c0_71, %c0_72, %c0_73] : memref<2x32x32xf32, #tpu.memory_space<vmem>>, vector<2x32x32xf32>
      %c0_74 = arith.constant 0 : index
      %c0_75 = arith.constant 0 : index
      %c0_76 = arith.constant 0 : index
      %120 = vector.load %arg11[%c0_74, %c0_75, %c0_76] : memref<2x32x32xf32, #tpu.memory_space<vmem>>, vector<2x32x32xf32>
      tpu.vector_store %arg11[%c0_74, %c0_75, %c0_76], %119 {strides = array<i32>} : memref<2x32x32xf32, #tpu.memory_space<vmem>>, vector<2x32x32xf32>,
      %cst_77 = arith.constant 0.000000e+00 : f32
      %121 = vector.broadcast %cst_77 : f32 to vector<32x128xf32>
      %c0_78 = arith.constant 0 : index
      %c0_79 = arith.constant 0 : index
      %122 = vector.load %arg12[%c0_78, %c0_79] : memref<32x128xf32, #tpu.memory_space<vmem>>, vector<32x128xf32>
      tpu.vector_store %arg12[%c0_78, %c0_79], %121 {strides = array<i32>} : memref<32x128xf32, #tpu.memory_space<vmem>>, vector<32x128xf32>,
    } else {
    }
    %c0 = arith.constant 0 : index
    %c0_1 = arith.constant 0 : index
    %3 = vector.load %arg3[%c0, %c0_1] : memref<96x32xf32, #tpu.memory_space<vmem>>, vector<96x32xf32>
    %c0_2 = arith.constant 0 : index
    %c0_3 = arith.constant 0 : index
    %c0_4 = arith.constant 0 : index
    %4 = vector.load %arg1[%c0_2, %c0_3, %c0_4] : memref<1x32x4xf32, #tpu.memory_space<vmem>>, vector<1x32x4xf32>
    %5 = vector.shape_cast %4 : vector<1x32x4xf32> to vector<32x4xf32>
    %c0_5 = arith.constant 0 : index
    %c0_6 = arith.constant 0 : index
    %6 = vector.load %arg4[%c0_5, %c0_6] : memref<384x96xf32, #tpu.memory_space<vmem>>, vector<384x96xf32>
    %c0_7 = arith.constant 0 : index
    %c0_8 = arith.constant 0 : index
    %7 = vector.load %arg5[%c0_7, %c0_8] : memref<1x96xf32, #tpu.memory_space<vmem>>, vector<1x96xf32>
    %c0_9 = arith.constant 0 : index
    %c0_10 = arith.constant 0 : index
    %8 = vector.load %arg6[%c0_9, %c0_10] : memref<96x32xf32, #tpu.memory_space<vmem>>, vector<96x32xf32>
    %c0_11 = arith.constant 0 : index
    %c0_12 = arith.constant 0 : index
    %c0_13 = arith.constant 0 : index
    %9 = vector.load %arg11[%c0_11, %c0_12, %c0_13] : memref<2x32x32xf32, #tpu.memory_space<vmem>>, vector<1x32x32xf32>
    %10 = vector.shape_cast %9 : vector<1x32x32xf32> to vector<32x32xf32>
    %c0_14 = arith.constant 0 : index
    %c0_15 = arith.constant 0 : index
    %11 = vector.load %arg12[%c0_14, %c0_15] : memref<32x128xf32, #tpu.memory_space<vmem>>, vector<32x4xf32>
    tpu.vector_store %arg12[%c0_14, %c0_15], %5 {strides = array<i32>} : memref<32x128xf32, #tpu.memory_space<vmem>>, vector<32x4xf32>,
    %c0_16 = arith.constant 0 : index
    %c4 = arith.constant 4 : index
    %12 = vector.load %arg12[%c0_16, %c4] : memref<32x128xf32, #tpu.memory_space<vmem>>, vector<32x32xf32>
    tpu.vector_store %arg12[%c0_16, %c4], %10 {strides = array<i32>} : memref<32x128xf32, #tpu.memory_space<vmem>>, vector<32x32xf32>,
    %c0_17 = arith.constant 0 : index
    %c0_18 = arith.constant 0 : index
    %13 = vector.load %arg12[%c0_17, %c0_18] : memref<32x128xf32, #tpu.memory_space<vmem>>, vector<32x128xf32>
    %cst = arith.constant dense<0.000000e+00> : vector<96x128xf32>
    %14 = tpu.matmul %3, %13, %cst {dimension_numbers = #tpu.dot_dimension_numbers<[1], [0], [0], [1], [0, 0, 1, 1], [], []>} : vector<96x32xf32>, vector<32x128xf32>, vector<96x128xf32> -> vector<96x128xf32>
    %15 = vector.extract_strided_slice %14 {offsets = [0, 0], sizes = [32, 128], strides = [1, 1]} : vector<96x128xf32> to vector<32x128xf32>
    %c0_19 = arith.constant 0 : index
    %c0_20 = arith.constant 0 : index
    %16 = vector.load %arg13[%c0_19, %c0_20] : memref<32x384xf32, #tpu.memory_space<vmem>>, vector<32x128xf32>
    tpu.vector_store %arg13[%c0_19, %c0_20], %15 {strides = array<i32>} : memref<32x384xf32, #tpu.memory_space<vmem>>, vector<32x128xf32>,
    %17 = vector.extract_strided_slice %14 {offsets = [32, 0], sizes = [32, 128], strides = [1, 1]} : vector<96x128xf32> to vector<32x128xf32>
    %c0_21 = arith.constant 0 : index
    %c128 = arith.constant 128 : index
    %18 = vector.load %arg13[%c0_21, %c128] : memref<32x384xf32, #tpu.memory_space<vmem>>, vector<32x128xf32>
    tpu.vector_store %arg13[%c0_21, %c128], %17 {strides = array<i32>} : memref<32x384xf32, #tpu.memory_space<vmem>>, vector<32x128xf32>,
    %19 = vector.extract_strided_slice %14 {offsets = [64, 0], sizes = [32, 128], strides = [1, 1]} : vector<96x128xf32> to vector<32x128xf32>
    %c0_22 = arith.constant 0 : index
    %c256 = arith.constant 256 : index
    %20 = vector.load %arg13[%c0_22, %c256] : memref<32x384xf32, #tpu.memory_space<vmem>>, vector<32x128xf32>
    tpu.vector_store %arg13[%c0_22, %c256], %19 {strides = array<i32>} : memref<32x384xf32, #tpu.memory_space<vmem>>, vector<32x128xf32>,
    %c0_23 = arith.constant 0 : index
    %c0_24 = arith.constant 0 : index
    %21 = vector.load %arg13[%c0_23, %c0_24] : memref<32x384xf32, #tpu.memory_space<vmem>>, vector<32x384xf32>
    %cst_25 = arith.constant dense<0.000000e+00> : vector<32x96xf32>
    %22 = tpu.matmul %21, %6, %cst_25 {dimension_numbers = #tpu.dot_dimension_numbers<[1], [0], [0], [1], [0, 0, 1, 1], [], []>} : vector<32x384xf32>, vector<384x96xf32>, vector<32x96xf32> -> vector<32x96xf32>
    %23 = vector.broadcast %7 : vector<1x96xf32> to vector<32x96xf32>
    %24 = arith.addf %22, %23 : vector<32x96xf32>
    %25 = vector.extract_strided_slice %24 {offsets = [0, 0], sizes = [32, 32], strides = [1, 1]} : vector<32x96xf32> to vector<32x32xf32>
    %26 = arith.negf %25 : vector<32x32xf32>
    %27 = math.exp %26 : vector<32x32xf32>
    %cst_26 = arith.constant 1.000000e+00 : f32
    %28 = vector.broadcast %cst_26 : f32 to vector<32x32xf32>
    %29 = arith.addf %28, %27 : vector<32x32xf32>
    %30 = arith.divf %28, %29 : vector<32x32xf32>
    %31 = vector.extract_strided_slice %24 {offsets = [0, 32], sizes = [32, 32], strides = [1, 1]} : vector<32x96xf32> to vector<32x32xf32>
    %32 = arith.negf %31 : vector<32x32xf32>
    %33 = math.exp %32 : vector<32x32xf32>
    %cst_27 = arith.constant 1.000000e+00 : f32
    %34 = vector.broadcast %cst_27 : f32 to vector<32x32xf32>
    %35 = arith.addf %34, %33 : vector<32x32xf32>
    %36 = arith.divf %34, %35 : vector<32x32xf32>
    %37 = vector.extract_strided_slice %24 {offsets = [0, 64], sizes = [32, 32], strides = [1, 1]} : vector<32x96xf32> to vector<32x32xf32>
    %38 = arith.mulf %30, %10 : vector<32x32xf32>
    %cst_28 = arith.constant dense<0.000000e+00> : vector<96x32xf32>
    %39 = tpu.matmul %3, %38, %cst_28 {dimension_numbers = #tpu.dot_dimension_numbers<[1], [0], [0], [1], [0, 0, 1, 1], [], []>} : vector<96x32xf32>, vector<32x32xf32>, vector<96x32xf32> -> vector<96x32xf32>
    %40 = vector.extract_strided_slice %39 {offsets = [0, 0], sizes = [32, 32], strides = [1, 1]} : vector<96x32xf32> to vector<32x32xf32>
    %41 = vector.extract_strided_slice %8 {offsets = [0, 0], sizes = [32, 32], strides = [1, 1]} : vector<96x32xf32> to vector<32x32xf32>
    %cst_29 = arith.constant dense<0.000000e+00> : vector<32x32xf32>
    %42 = tpu.matmul %40, %41, %cst_29 {dimension_numbers = #tpu.dot_dimension_numbers<[1], [0], [0], [1], [0, 0, 1, 1], [], []>} : vector<32x32xf32>, vector<32x32xf32>, vector<32x32xf32> -> vector<32x32xf32>
    %43 = arith.addf %37, %42 : vector<32x32xf32>
    %44 = vector.extract_strided_slice %39 {offsets = [32, 0], sizes = [32, 32], strides = [1, 1]} : vector<96x32xf32> to vector<32x32xf32>
    %45 = vector.extract_strided_slice %8 {offsets = [32, 0], sizes = [32, 32], strides = [1, 1]} : vector<96x32xf32> to vector<32x32xf32>
    %cst_30 = arith.constant dense<0.000000e+00> : vector<32x32xf32>
    %46 = tpu.matmul %44, %45, %cst_30 {dimension_numbers = #tpu.dot_dimension_numbers<[1], [0], [0], [1], [0, 0, 1, 1], [], []>} : vector<32x32xf32>, vector<32x32xf32>, vector<32x32xf32> -> vector<32x32xf32>
    %47 = arith.addf %43, %46 : vector<32x32xf32>
    %48 = vector.extract_strided_slice %39 {offsets = [64, 0], sizes = [32, 32], strides = [1, 1]} : vector<96x32xf32> to vector<32x32xf32>
    %49 = vector.extract_strided_slice %8 {offsets = [64, 0], sizes = [32, 32], strides = [1, 1]} : vector<96x32xf32> to vector<32x32xf32>
    %cst_31 = arith.constant dense<0.000000e+00> : vector<32x32xf32>
    %50 = tpu.matmul %48, %49, %cst_31 {dimension_numbers = #tpu.dot_dimension_numbers<[1], [0], [0], [1], [0, 0, 1, 1], [], []>} : vector<32x32xf32>, vector<32x32xf32>, vector<32x32xf32> -> vector<32x32xf32>
    %51 = arith.addf %47, %50 : vector<32x32xf32>
    %52 = math.tanh %51 : vector<32x32xf32>
    %53 = arith.mulf %36, %10 : vector<32x32xf32>
    %cst_32 = arith.constant 1.000000e+00 : f32
    %54 = vector.broadcast %cst_32 : f32 to vector<32x32xf32>
    %55 = arith.subf %54, %36 : vector<32x32xf32>
    %56 = arith.mulf %55, %52 : vector<32x32xf32>
    %57 = arith.addf %53, %56 : vector<32x32xf32>
    %c0_33 = arith.constant 0 : index
    %c0_34 = arith.constant 0 : index
    %c0_35 = arith.constant 0 : index
    %58 = vector.load %arg11[%c0_33, %c0_34, %c0_35] : memref<2x32x32xf32, #tpu.memory_space<vmem>>, vector<1x32x32xf32>
    %59 = vector.shape_cast %58 : vector<1x32x32xf32> to vector<32x32xf32>
    %60 = vector.shape_cast %57 : vector<32x32xf32> to vector<1x32x32xf32>
    tpu.vector_store %arg11[%c0_33, %c0_34, %c0_35], %60 {strides = array<i32>} : memref<2x32x32xf32, #tpu.memory_space<vmem>>, vector<1x32x32xf32>,
    %c0_36 = arith.constant 0 : index
    %c0_37 = arith.constant 0 : index
    %61 = vector.load %arg7[%c0_36, %c0_37] : memref<384x96xf32, #tpu.memory_space<vmem>>, vector<384x96xf32>
    %c0_38 = arith.constant 0 : index
    %c0_39 = arith.constant 0 : index
    %62 = vector.load %arg8[%c0_38, %c0_39] : memref<1x96xf32, #tpu.memory_space<vmem>>, vector<1x96xf32>
    %c0_40 = arith.constant 0 : index
    %c0_41 = arith.constant 0 : index
    %63 = vector.load %arg9[%c0_40, %c0_41] : memref<96x32xf32, #tpu.memory_space<vmem>>, vector<96x32xf32>
    %c1 = arith.constant 1 : index
    %c0_42 = arith.constant 0 : index
    %c0_43 = arith.constant 0 : index
    %64 = vector.load %arg11[%c1, %c0_42, %c0_43] : memref<2x32x32xf32, #tpu.memory_space<vmem>>, vector<1x32x32xf32>
    %65 = vector.shape_cast %64 : vector<1x32x32xf32> to vector<32x32xf32>
    %c0_44 = arith.constant 0 : index
    %c0_45 = arith.constant 0 : index
    %66 = vector.load %arg12[%c0_44, %c0_45] : memref<32x128xf32, #tpu.memory_space<vmem>>, vector<32x32xf32>
    tpu.vector_store %arg12[%c0_44, %c0_45], %57 {strides = array<i32>} : memref<32x128xf32, #tpu.memory_space<vmem>>, vector<32x32xf32>,
    %c0_46 = arith.constant 0 : index
    %c32 = arith.constant 32 : index
    %67 = vector.load %arg12[%c0_46, %c32] : memref<32x128xf32, #tpu.memory_space<vmem>>, vector<32x32xf32>
    tpu.vector_store %arg12[%c0_46, %c32], %65 {strides = array<i32>} : memref<32x128xf32, #tpu.memory_space<vmem>>, vector<32x32xf32>,
    %c0_47 = arith.constant 0 : index
    %c0_48 = arith.constant 0 : index
    %68 = vector.load %arg12[%c0_47, %c0_48] : memref<32x128xf32, #tpu.memory_space<vmem>>, vector<32x128xf32>
    %cst_49 = arith.constant dense<0.000000e+00> : vector<96x128xf32>
    %69 = tpu.matmul %3, %68, %cst_49 {dimension_numbers = #tpu.dot_dimension_numbers<[1], [0], [0], [1], [0, 0, 1, 1], [], []>} : vector<96x32xf32>, vector<32x128xf32>, vector<96x128xf32> -> vector<96x128xf32>
    %70 = vector.extract_strided_slice %69 {offsets = [0, 0], sizes = [32, 128], strides = [1, 1]} : vector<96x128xf32> to vector<32x128xf32>
    %c0_50 = arith.constant 0 : index
    %c0_51 = arith.constant 0 : index
    %71 = vector.load %arg13[%c0_50, %c0_51] : memref<32x384xf32, #tpu.memory_space<vmem>>, vector<32x128xf32>
    tpu.vector_store %arg13[%c0_50, %c0_51], %70 {strides = array<i32>} : memref<32x384xf32, #tpu.memory_space<vmem>>, vector<32x128xf32>,
    %72 = vector.extract_strided_slice %69 {offsets = [32, 0], sizes = [32, 128], strides = [1, 1]} : vector<96x128xf32> to vector<32x128xf32>
    %c0_52 = arith.constant 0 : index
    %c128_53 = arith.constant 128 : index
    %73 = vector.load %arg13[%c0_52, %c128_53] : memref<32x384xf32, #tpu.memory_space<vmem>>, vector<32x128xf32>
    tpu.vector_store %arg13[%c0_52, %c128_53], %72 {strides = array<i32>} : memref<32x384xf32, #tpu.memory_space<vmem>>, vector<32x128xf32>,
    %74 = vector.extract_strided_slice %69 {offsets = [64, 0], sizes = [32, 128], strides = [1, 1]} : vector<96x128xf32> to vector<32x128xf32>
    %c0_54 = arith.constant 0 : index
    %c256_55 = arith.constant 256 : index
    %75 = vector.load %arg13[%c0_54, %c256_55] : memref<32x384xf32, #tpu.memory_space<vmem>>, vector<32x128xf32>
    tpu.vector_store %arg13[%c0_54, %c256_55], %74 {strides = array<i32>} : memref<32x384xf32, #tpu.memory_space<vmem>>, vector<32x128xf32>,
    %c0_56 = arith.constant 0 : index
    %c0_57 = arith.constant 0 : index
    %76 = vector.load %arg13[%c0_56, %c0_57] : memref<32x384xf32, #tpu.memory_space<vmem>>, vector<32x384xf32>
    %cst_58 = arith.constant dense<0.000000e+00> : vector<32x96xf32>
    %77 = tpu.matmul %76, %61, %cst_58 {dimension_numbers = #tpu.dot_dimension_numbers<[1], [0], [0], [1], [0, 0, 1, 1], [], []>} : vector<32x384xf32>, vector<384x96xf32>, vector<32x96xf32> -> vector<32x96xf32>
    %78 = vector.broadcast %62 : vector<1x96xf32> to vector<32x96xf32>
    %79 = arith.addf %77, %78 : vector<32x96xf32>
    %80 = vector.extract_strided_slice %79 {offsets = [0, 0], sizes = [32, 32], strides = [1, 1]} : vector<32x96xf32> to vector<32x32xf32>
    %81 = arith.negf %80 : vector<32x32xf32>
    %82 = math.exp %81 : vector<32x32xf32>
    %cst_59 = arith.constant 1.000000e+00 : f32
    %83 = vector.broadcast %cst_59 : f32 to vector<32x32xf32>
    %84 = arith.addf %83, %82 : vector<32x32xf32>
    %85 = arith.divf %83, %84 : vector<32x32xf32>
    %86 = vector.extract_strided_slice %79 {offsets = [0, 32], sizes = [32, 32], strides = [1, 1]} : vector<32x96xf32> to vector<32x32xf32>
    %87 = arith.negf %86 : vector<32x32xf32>
    %88 = math.exp %87 : vector<32x32xf32>
    %cst_60 = arith.constant 1.000000e+00 : f32
    %89 = vector.broadcast %cst_60 : f32 to vector<32x32xf32>
    %90 = arith.addf %89, %88 : vector<32x32xf32>
    %91 = arith.divf %89, %90 : vector<32x32xf32>
    %92 = vector.extract_strided_slice %79 {offsets = [0, 64], sizes = [32, 32], strides = [1, 1]} : vector<32x96xf32> to vector<32x32xf32>
    %93 = arith.mulf %85, %65 : vector<32x32xf32>
    %cst_61 = arith.constant dense<0.000000e+00> : vector<96x32xf32>
    %94 = tpu.matmul %3, %93, %cst_61 {dimension_numbers = #tpu.dot_dimension_numbers<[1], [0], [0], [1], [0, 0, 1, 1], [], []>} : vector<96x32xf32>, vector<32x32xf32>, vector<96x32xf32> -> vector<96x32xf32>
    %95 = vector.extract_strided_slice %94 {offsets = [0, 0], sizes = [32, 32], strides = [1, 1]} : vector<96x32xf32> to vector<32x32xf32>
    %96 = vector.extract_strided_slice %63 {offsets = [0, 0], sizes = [32, 32], strides = [1, 1]} : vector<96x32xf32> to vector<32x32xf32>
    %cst_62 = arith.constant dense<0.000000e+00> : vector<32x32xf32>
    %97 = tpu.matmul %95, %96, %cst_62 {dimension_numbers = #tpu.dot_dimension_numbers<[1], [0], [0], [1], [0, 0, 1, 1], [], []>} : vector<32x32xf32>, vector<32x32xf32>, vector<32x32xf32> -> vector<32x32xf32>
    %98 = arith.addf %92, %97 : vector<32x32xf32>
    %99 = vector.extract_strided_slice %94 {offsets = [32, 0], sizes = [32, 32], strides = [1, 1]} : vector<96x32xf32> to vector<32x32xf32>
    %100 = vector.extract_strided_slice %63 {offsets = [32, 0], sizes = [32, 32], strides = [1, 1]} : vector<96x32xf32> to vector<32x32xf32>
    %cst_63 = arith.constant dense<0.000000e+00> : vector<32x32xf32>
    %101 = tpu.matmul %99, %100, %cst_63 {dimension_numbers = #tpu.dot_dimension_numbers<[1], [0], [0], [1], [0, 0, 1, 1], [], []>} : vector<32x32xf32>, vector<32x32xf32>, vector<32x32xf32> -> vector<32x32xf32>
    %102 = arith.addf %98, %101 : vector<32x32xf32>
    %103 = vector.extract_strided_slice %94 {offsets = [64, 0], sizes = [32, 32], strides = [1, 1]} : vector<96x32xf32> to vector<32x32xf32>
    %104 = vector.extract_strided_slice %63 {offsets = [64, 0], sizes = [32, 32], strides = [1, 1]} : vector<96x32xf32> to vector<32x32xf32>
    %cst_64 = arith.constant dense<0.000000e+00> : vector<32x32xf32>
    %105 = tpu.matmul %103, %104, %cst_64 {dimension_numbers = #tpu.dot_dimension_numbers<[1], [0], [0], [1], [0, 0, 1, 1], [], []>} : vector<32x32xf32>, vector<32x32xf32>, vector<32x32xf32> -> vector<32x32xf32>
    %106 = arith.addf %102, %105 : vector<32x32xf32>
    %107 = math.tanh %106 : vector<32x32xf32>
    %108 = arith.mulf %91, %65 : vector<32x32xf32>
    %cst_65 = arith.constant 1.000000e+00 : f32
    %109 = vector.broadcast %cst_65 : f32 to vector<32x32xf32>
    %110 = arith.subf %109, %91 : vector<32x32xf32>
    %111 = arith.mulf %110, %107 : vector<32x32xf32>
    %112 = arith.addf %108, %111 : vector<32x32xf32>
    %c1_66 = arith.constant 1 : index
    %c0_67 = arith.constant 0 : index
    %c0_68 = arith.constant 0 : index
    %113 = vector.load %arg11[%c1_66, %c0_67, %c0_68] : memref<2x32x32xf32, #tpu.memory_space<vmem>>, vector<1x32x32xf32>
    %114 = vector.shape_cast %113 : vector<1x32x32xf32> to vector<32x32xf32>
    %115 = vector.shape_cast %112 : vector<32x32xf32> to vector<1x32x32xf32>
    tpu.vector_store %arg11[%c1_66, %c0_67, %c0_68], %115 {strides = array<i32>} : memref<2x32x32xf32, #tpu.memory_space<vmem>>, vector<1x32x32xf32>,
    %c0_i32_69 = arith.constant 0 : i32
    %116 = arith.cmpi eq, %arg0, %c0_i32_69 : i32
    %117 = arith.extui %116 : i1 to i32
    %c0_i32_70 = arith.constant 0 : i32
    %118 = arith.cmpi ne, %117, %c0_i32_70 : i32
    scf.if %118 {
      %c0_71 = arith.constant 0 : index
      %c0_72 = arith.constant 0 : index
      %c0_73 = arith.constant 0 : index
      %119 = vector.load %arg11[%c0_71, %c0_72, %c0_73] : memref<2x32x32xf32, #tpu.memory_space<vmem>>, vector<2x32x32xf32>
      %c0_74 = arith.constant 0 : index
      %c0_75 = arith.constant 0 : index
      %c0_76 = arith.constant 0 : index
      %120 = vector.load %arg10[%c0_74, %c0_75, %c0_76] : memref<2x32x32xf32, #tpu.memory_space<vmem>>, vector<2x32x32xf32>
      tpu.vector_store %arg10[%c0_74, %c0_75, %c0_76], %119 {strides = array<i32>} : memref<2x32x32xf32, #tpu.memory_space<vmem>>, vector<2x32x32xf32>,
    } else {
    }
    return
  }
  func.func @transform_0(%arg0: i32) -> (i32, i32, i32) {
    %c0_i32 = arith.constant 0 : i32
    %c0_i32_0 = arith.constant 0 : i32
    %c0_i32_1 = arith.constant 0 : i32
    return %arg0, %c0_i32, %c0_i32_0 : i32, i32, i32
  }
  func.func @transform_1(%arg0: i32) -> (i32, i32, i32) {
    %c0_i32 = arith.constant 0 : i32
    %c0_i32_0 = arith.constant 0 : i32
    %c0_i32_1 = arith.constant 0 : i32
    %c0_i32_2 = arith.constant 0 : i32
    return %c0_i32, %c0_i32_0, %c0_i32_1 : i32, i32, i32
  }
  func.func @transform_2(%arg0: i32) -> (i32, i32) {
    %c0_i32 = arith.constant 0 : i32
    %c0_i32_0 = arith.constant 0 : i32
    %c0_i32_1 = arith.constant 0 : i32
    return %c0_i32, %c0_i32_0 : i32, i32
  }
  func.func @transform_3(%arg0: i32) -> (i32, i32) {
    %c0_i32 = arith.constant 0 : i32
    %c0_i32_0 = arith.constant 0 : i32
    %c0_i32_1 = arith.constant 0 : i32
    return %c0_i32, %c0_i32_0 : i32, i32
  }
  func.func @transform_4(%arg0: i32) -> (i32, i32) {
    %c0_i32 = arith.constant 0 : i32
    %c0_i32_0 = arith.constant 0 : i32
    %c0_i32_1 = arith.constant 0 : i32
    return %c0_i32, %c0_i32_0 : i32, i32
  }
  func.func @transform_5(%arg0: i32) -> (i32, i32) {
    %c0_i32 = arith.constant 0 : i32
    %c0_i32_0 = arith.constant 0 : i32
    %c0_i32_1 = arith.constant 0 : i32
    return %c0_i32, %c0_i32_0 : i32, i32
  }
  func.func @transform_6(%arg0: i32) -> (i32, i32) {
    %c0_i32 = arith.constant 0 : i32
    %c0_i32_0 = arith.constant 0 : i32
    %c0_i32_1 = arith.constant 0 : i32
    return %c0_i32, %c0_i32_0 : i32, i32
  }
  func.func @transform_7(%arg0: i32) -> (i32, i32) {
    %c0_i32 = arith.constant 0 : i32
    %c0_i32_0 = arith.constant 0 : i32
    %c0_i32_1 = arith.constant 0 : i32
    return %c0_i32, %c0_i32_0 : i32, i32
  }
  func.func @transform_8(%arg0: i32) -> (i32, i32) {
    %c0_i32 = arith.constant 0 : i32
    %c0_i32_0 = arith.constant 0 : i32
    %c0_i32_1 = arith.constant 0 : i32
    return %c0_i32, %c0_i32_0 : i32, i32
  }
  func.func @transform_9(%arg0: i32) -> (i32, i32, i32) {
    %c0_i32 = arith.constant 0 : i32
    %c0_i32_0 = arith.constant 0 : i32
    %c0_i32_1 = arith.constant 0 : i32
    %c0_i32_2 = arith.constant 0 : i32
    return %c0_i32, %c0_i32_0, %c0_i32_1 : i32, i32, i32
  }
}

</mosaic_0001>

<llo_original>
// kernel: _run.1
$region0: #{_run.1}
  #allocation0 [shape = 'u32[]', space=smem, size = 0x4, offset = 0x4, fixed_abs, tag = 'smem constant byte address 0x4 - core index']
  #allocation1 [shape = 'u32[144,128]{1,0:T(1,128)}', space=vmem, size = 0x12000, scoped, tag = 'internal scratch']
  #allocation2 [shape = 'f32[2,32,32]{2,1,0:T(8,128)}', space=vmem, size = 0x8000, scoped, tag = 'scratch operand']
  #allocation3 [shape = 'f32[32,128]{1,0:T(8,128)}', space=vmem, size = 0x4000, scoped, tag = 'scratch operand']
  #allocation4 [shape = 'f32[32,384]{1,0:T(8,128)}', space=vmem, size = 0xc000, scoped, tag = 'scratch operand']
  %s0 = inlined_call_operand.vmem [shape: f32[1,32,4], index: 0, kind: input, shape index: {}]
  %s1 = inlined_call_operand.vmem [shape: f32[2,32,32], index: 1, kind: input, shape index: {}]
  %s2 = inlined_call_operand.vmem [shape: f32[96,32], index: 2, kind: input, shape index: {}]
  %s3 = inlined_call_operand.vmem [shape: f32[384,96], index: 3, kind: input, shape index: {}]
  %s4 = inlined_call_operand.vmem [shape: f32[1,96], index: 4, kind: input, shape index: {}]
  %s5 = inlined_call_operand.vmem [shape: f32[96,32], index: 5, kind: input, shape index: {}]
  %s6 = inlined_call_operand.vmem [shape: f32[384,96], index: 6, kind: input, shape index: {}]
  %s7 = inlined_call_operand.vmem [shape: f32[1,96], index: 7, kind: input, shape index: {}]
  %s8 = inlined_call_operand.vmem [shape: f32[96,32], index: 8, kind: input, shape index: {}]
  %s9 = inlined_call_operand.vmem [shape: f32[2,32,32], index: 9, kind: output, shape index: {}]
  %s10 = sld [smem:[#allocation0]]
  $region54: #{_run.1} parent=0
    _
  %s12 = ssub.s32 1, %s10
  %s13 = scalar_select 0, %s12, %s10
  // Predicated region
  $region2: #{_run.1} parent=0 // pred_check
    _
  $region3: #{_run.1} parent=0 // pred_check_branch
    %15 = sbr.rel (0) target = $region5
  $region4: #{_run.1} parent=0 // pred_region
    _
  $region5: #{_run.1} parent=0 // pred_fallthru
    _
  // Predicated region
  $region6: #{_run.1} parent=0 // pred_check
    _
  $region7: #{_run.1} parent=0 // pred_check_branch
    %17 = sbr.rel (0) target = $region9
  $region8: #{_run.1} parent=0 // pred_region
    _
  $region9: #{_run.1} parent=0 // pred_fallthru
    _
  // Predicated region
  $region10: #{_run.1} parent=0 // pred_check
    _
  $region11: #{_run.1} parent=0 // pred_check_branch
    %19 = sbr.rel (0) target = $region13
  $region12: #{_run.1} parent=0 // pred_region
    _
  $region13: #{_run.1} parent=0 // pred_fallthru
    _
  // Predicated region
  $region14: #{_run.1} parent=0 // pred_check
    _
  $region15: #{_run.1} parent=0 // pred_check_branch
    %21 = sbr.rel (0) target = $region17
  $region16: #{_run.1} parent=0 // pred_region
    _
  $region17: #{_run.1} parent=0 // pred_fallthru
    _
  // Predicated region
  $region18: #{_run.1} parent=0 // pred_check
    _
  $region19: #{_run.1} parent=0 // pred_check_branch
    %23 = sbr.rel (0) target = $region21
  $region20: #{_run.1} parent=0 // pred_region
    _
  $region21: #{_run.1} parent=0 // pred_fallthru
    _
  // Predicated region
  $region22: #{_run.1} parent=0 // pred_check
    _
  $region23: #{_run.1} parent=0 // pred_check_branch
    %25 = sbr.rel (0) target = $region25
  $region24: #{_run.1} parent=0 // pred_region
    _
  $region25: #{_run.1} parent=0 // pred_fallthru
    _
  // Predicated region
  $region26: #{_run.1} parent=0 // pred_check
    _
  $region27: #{_run.1} parent=0 // pred_check_branch
    %27 = sbr.rel (0) target = $region29
  $region28: #{_run.1} parent=0 // pred_region
    _
  $region29: #{_run.1} parent=0 // pred_fallthru
    _
  // Predicated region
  $region30: #{_run.1} parent=0 // pred_check
    _
  $region31: #{_run.1} parent=0 // pred_check_branch
    %29 = sbr.rel (0) target = $region33
  $region32: #{_run.1} parent=0 // pred_region
    _
  $region33: #{_run.1} parent=0 // pred_fallthru
    _
  // Predicated region
  $region34: #{_run.1} parent=0 // pred_check
    _
  $region35: #{_run.1} parent=0 // pred_check_branch
    %31 = sbr.rel (0) target = $region37
  $region36: #{_run.1} parent=0 // pred_region
    _
  $region37: #{_run.1} parent=0 // pred_fallthru
    _
  %p32 = scmp.eq.s32.totalorder 0, 0
  // Predicated region
  $region38: #{_run.1} parent=0 // pred_check
    %p33 = pneg %p32
  $region39: #{_run.1} parent=0 // pred_check_branch
    %35 = sbr.rel (%p33) target = $region41
  $region40: #{_run.1} parent=0 // pred_region
    %v36 = vld [vmem:[%s1] sm:$0xff]
    %v37 = vld [vmem:[%s1 + $0x8] sm:$0xff]
    %v38 = vld [vmem:[%s1 + $0x10] sm:$0xff]
    %v39 = vld [vmem:[%s1 + $0x18] sm:$0xff]
    %v40 = vld [vmem:[%s1 + $0x20] sm:$0xff]
    %v41 = vld [vmem:[%s1 + $0x28] sm:$0xff]
    %v42 = vld [vmem:[%s1 + $0x30] sm:$0xff]
    %v43 = vld [vmem:[%s1 + $0x38] sm:$0xff]
    %vm44 = vcmask 261120
    %45 = vst.msk [vmem:[#allocation2] sm:$0xff] %vm44, %v36
    %46 = vst.msk [vmem:[#allocation2 + $0x8] sm:$0xff] %vm44, %v37
    %47 = vst.msk [vmem:[#allocation2 + $0x10] sm:$0xff] %vm44, %v38
    %48 = vst.msk [vmem:[#allocation2 + $0x18] sm:$0xff] %vm44, %v39
    %49 = vst.msk [vmem:[#allocation2 + $0x20] sm:$0xff] %vm44, %v40
    %50 = vst.msk [vmem:[#allocation2 + $0x28] sm:$0xff] %vm44, %v41
    %51 = vst.msk [vmem:[#allocation2 + $0x30] sm:$0xff] %vm44, %v42
    %52 = vst.msk [vmem:[#allocation2 + $0x38] sm:$0xff] %vm44, %v43
    %53 = vst [vmem:[#allocation3] sm:$0xff] 0.0
    %54 = vst [vmem:[#allocation3 + $0x8] sm:$0xff] 0.0
    %55 = vst [vmem:[#allocation3 + $0x10] sm:$0xff] 0.0
    %56 = vst [vmem:[#allocation3 + $0x18] sm:$0xff] 0.0
  $region41: #{_run.1} parent=0 // pred_fallthru
    _
  %v57 = vld [vmem:[%s2] sm:$0xff]
  %v58 = vld [vmem:[%s2 + $0x8] sm:$0xff]
  %v59 = vld [vmem:[%s2 + $0x10] sm:$0xff]
  %v60 = vld [vmem:[%s2 + $0x18] sm:$0xff]
  %v61 = vld [vmem:[%s2 + $0x20] sm:$0xff]
  %v62 = vld [vmem:[%s2 + $0x28] sm:$0xff]
  %v63 = vld [vmem:[%s2 + $0x30] sm:$0xff]
  %v64 = vld [vmem:[%s2 + $0x38] sm:$0xff]
  %v65 = vld [vmem:[%s2 + $0x40] sm:$0xff]
  %v66 = vld [vmem:[%s2 + $0x48] sm:$0xff]
  %v67 = vld [vmem:[%s2 + $0x50] sm:$0xff]
  %v68 = vld [vmem:[%s2 + $0x58] sm:$0xff]
  %v69 = vld [vmem:[%s0] sm:$0xff]
  %v70 = vld [vmem:[%s0 + $0x8] sm:$0xff]
  %v71 = vld [vmem:[%s0 + $0x10] sm:$0xff]
  %v72 = vld [vmem:[%s0 + $0x18] sm:$0xff]
  %v73 = vld [vmem:[%s3] sm:$0xff]
  %v74 = vld [vmem:[%s3 + $0x8] sm:$0xff]
  %v75 = vld [vmem:[%s3 + $0x10] sm:$0xff]
  %v76 = vld [vmem:[%s3 + $0x18] sm:$0xff]
  %v77 = vld [vmem:[%s3 + $0x20] sm:$0xff]
  %v78 = vld [vmem:[%s3 + $0x28] sm:$0xff]
  %v79 = vld [vmem:[%s3 + $0x30] sm:$0xff]
  %v80 = vld [vmem:[%s3 + $0x38] sm:$0xff]
  %v81 = vld [vmem:[%s3 + $0x40] sm:$0xff]
  %v82 = vld [vmem:[%s3 + $0x48] sm:$0xff]
  %v83 = vld [vmem:[%s3 + $0x50] sm:$0xff]
  %v84 = vld [vmem:[%s3 + $0x58] sm:$0xff]
  %v85 = vld [vmem:[%s3 + $0x60] sm:$0xff]
  %v86 = vld [vmem:[%s3 + $0x68] sm:$0xff]
  %v87 = vld [vmem:[%s3 + $0x70] sm:$0xff]
  %v88 = vld [vmem:[%s3 + $0x78] sm:$0xff]
  %v89 = vld [vmem:[%s3 + $0x80] sm:$0xff]
  %v90 = vld [vmem:[%s3 + $0x88] sm:$0xff]
  %v91 = vld [vmem:[%s3 + $0x90] sm:$0xff]
  %v92 = vld [vmem:[%s3 + $0x98] sm:$0xff]
  %v93 = vld [vmem:[%s3 + $0xa0] sm:$0xff]
  %v94 = vld [vmem:[%s3 + $0xa8] sm:$0xff]
  %v95 = vld [vmem:[%s3 + $0xb0] sm:$0xff]
  %v96 = vld [vmem:[%s3 + $0xb8] sm:$0xff]
  %v97 = vld [vmem:[%s3 + $0xc0] sm:$0xff]
  %v98 = vld [vmem:[%s3 + $0xc8] sm:$0xff]
  %v99 = vld [vmem:[%s3 + $0xd0] sm:$0xff]
  %v100 = vld [vmem:[%s3 + $0xd8] sm:$0xff]
  %v101 = vld [vmem:[%s3 + $0xe0] sm:$0xff]
  %v102 = vld [vmem:[%s3 + $0xe8] sm:$0xff]
  %v103 = vld [vmem:[%s3 + $0xf0] sm:$0xff]
  %v104 = vld [vmem:[%s3 + $0xf8] sm:$0xff]
  %v105 = vld [vmem:[%s3 + $0x100] sm:$0xff]
  %v106 = vld [vmem:[%s3 + $0x108] sm:$0xff]
  %v107 = vld [vmem:[%s3 + $0x110] sm:$0xff]
  %v108 = vld [vmem:[%s3 + $0x118] sm:$0xff]
  %v109 = vld [vmem:[%s3 + $0x120] sm:$0xff]
  %v110 = vld [vmem:[%s3 + $0x128] sm:$0xff]
  %v111 = vld [vmem:[%s3 + $0x130] sm:$0xff]
  %v112 = vld [vmem:[%s3 + $0x138] sm:$0xff]
  %v113 = vld [vmem:[%s3 + $0x140] sm:$0xff]
  %v114 = vld [vmem:[%s3 + $0x148] sm:$0xff]
  %v115 = vld [vmem:[%s3 + $0x150] sm:$0xff]
  %v116 = vld [vmem:[%s3 + $0x158] sm:$0xff]
  %v117 = vld [vmem:[%s3 + $0x160] sm:$0xff]
  %v118 = vld [vmem:[%s3 + $0x168] sm:$0xff]
  %v119 = vld [vmem:[%s3 + $0x170] sm:$0xff]
  %v120 = vld [vmem:[%s3 + $0x178] sm:$0xff]
  %v121 = vld [vmem:[%s4] sm:$0x1]
  %v122 = vld [vmem:[%s5] sm:$0xff]
  %v123 = vld [vmem:[%s5 + $0x8] sm:$0xff]
  %v124 = vld [vmem:[%s5 + $0x10] sm:$0xff]
  %v125 = vld [vmem:[%s5 + $0x18] sm:$0xff]
  %v126 = vld [vmem:[%s5 + $0x20] sm:$0xff]
  %v127 = vld [vmem:[%s5 + $0x28] sm:$0xff]
  %v128 = vld [vmem:[%s5 + $0x30] sm:$0xff]
  %v129 = vld [vmem:[%s5 + $0x38] sm:$0xff]
  %v130 = vld [vmem:[%s5 + $0x40] sm:$0xff]
  %v131 = vld [vmem:[%s5 + $0x48] sm:$0xff]
  %v132 = vld [vmem:[%s5 + $0x50] sm:$0xff]
  %v133 = vld [vmem:[%s5 + $0x58] sm:$0xff]
  %v134 = vld [vmem:[#allocation2] sm:$0xff]
  %v135 = vld [vmem:[#allocation2 + $0x8] sm:$0xff]
  %v136 = vld [vmem:[#allocation2 + $0x10] sm:$0xff]
  %v137 = vld [vmem:[#allocation2 + $0x18] sm:$0xff]
  %vm138 = vcmask 31744
  %139 = vst.msk [vmem:[#allocation3] sm:$0xff] %vm138, %v69
  %140 = vst.msk [vmem:[#allocation3 + $0x8] sm:$0xff] %vm138, %v70
  %141 = vst.msk [vmem:[#allocation3 + $0x10] sm:$0xff] %vm138, %v71
  %142 = vst.msk [vmem:[#allocation3 + $0x18] sm:$0xff] %vm138, %v72
  %147 = vrot.lane.b32.xlu0 %v134, 4
  %v148 = vpop.permute.xlu0 %147
  %149 = vrot.lane.b32.xlu0 %v135, 4
  %v150 = vpop.permute.xlu0 %149
  %151 = vrot.lane.b32.xlu0 %v136, 4
  %v152 = vpop.permute.xlu0 %151
  %153 = vrot.lane.b32.xlu0 %v137, 4
  %v154 = vpop.permute.xlu0 %153
  %vm159 = vcmask 293920
  %160 = vst.msk [vmem:[#allocation3] sm:$0xff] %vm159, %v148
  %161 = vst.msk [vmem:[#allocation3 + $0x8] sm:$0xff] %vm159, %v150
  %162 = vst.msk [vmem:[#allocation3 + $0x10] sm:$0xff] %vm159, %v152
  %163 = vst.msk [vmem:[#allocation3 + $0x18] sm:$0xff] %vm159, %v154
  %v164 = vld [vmem:[#allocation3] sm:$0xff]
  %v165 = vld [vmem:[#allocation3 + $0x8] sm:$0xff]
  %v166 = vld [vmem:[#allocation3 + $0x10] sm:$0xff]
  %v167 = vld [vmem:[#allocation3 + $0x18] sm:$0xff]
  %vm168 = vcmask 261120
  %v170 = vsel %vm168, %v57, 0
  %v173 = vsel %vm168, %v58, 0
  %v176 = vsel %vm168, %v59, 0
  %v179 = vsel %vm168, %v60, 0
  %v182 = vsel %vm168, %v61, 0
  %v185 = vsel %vm168, %v62, 0
  %v188 = vsel %vm168, %v63, 0
  %v191 = vsel %vm168, %v64, 0
  %v194 = vsel %vm168, %v65, 0
  %v197 = vsel %vm168, %v66, 0
  %v200 = vsel %vm168, %v67, 0
  %v203 = vsel %vm168, %v68, 0
  %205 = vmatprep.subr.mxu0 0.0
  %206 = vmatpush1.msra.mxu0 %v164
  %207 = vmatprep.subr.mxu0 0.0
  %208 = vmatpush1.msra.mxu0 %v165
  %209 = vmatprep.subr.mxu0 0.0
  %210 = vmatpush1.msra.mxu0 %v166
  %211 = vmatprep.subr.mxu0 0.0
  %212 = vmatpush1.msra.mxu0 %v167
  %213 = vmatprep.subr.mxu0 0.0
  %214 = vmatpush1.msra.mxu0 0.0
  %215 = vmatprep.subr.mxu0 0.0
  %216 = vmatpush1.msra.mxu0 0.0
  %217 = vmatprep.subr.mxu0 0.0
  %218 = vmatpush1.msra.mxu0 0.0
  %219 = vmatprep.subr.mxu0 0.0
  %220 = vmatpush1.msra.mxu0 0.0
  %221 = vmatprep.subr.mxu0 0.0
  %222 = vmatpush1.msra.mxu0 0.0
  %223 = vmatprep.subr.mxu0 0.0
  %224 = vmatpush1.msra.mxu0 0.0
  %225 = vmatprep.subr.mxu0 0.0
  %226 = vmatpush1.msra.mxu0 0.0
  %227 = vmatprep.subr.mxu0 0.0
  %228 = vmatpush1.msra.mxu0 0.0
  %229 = vmatprep.subr.mxu0 0.0
  %230 = vmatpush1.msra.mxu0 0.0
  %231 = vmatprep.subr.mxu0 0.0
  %232 = vmatpush1.msra.mxu0 0.0
  %233 = vmatprep.subr.mxu0 0.0
  %234 = vmatpush1.msra.mxu0 0.0
  %235 = vmatprep.subr.mxu0 0.0
  %236 = vmatpush1.msra.mxu0 0.0
  %237 = vmatprep.subr.mxu0 0.0
  %238 = vmatpush1.msra.mxu0 0.0
  %239 = vmatprep.subr.mxu0 0.0
  %240 = vmatpush1.msra.mxu0 0.0
  %241 = vmatprep.subr.mxu0 0.0
  %242 = vmatpush1.msra.mxu0 0.0
  %243 = vmatprep.subr.mxu0 0.0
  %244 = vmatpush1.msra.mxu0 0.0
  %245 = vmatprep.subr.mxu0 0.0
  %246 = vmatpush1.msra.mxu0 0.0
  %247 = vmatprep.subr.mxu0 0.0
  %248 = vmatpush1.msra.mxu0 0.0
  %249 = vmatprep.subr.mxu0 0.0
  %250 = vmatpush1.msra.mxu0 0.0
  %251 = vmatprep.subr.mxu0 0.0
  %252 = vmatpush1.msra.mxu0 0.0
  %253 = vmatprep.subr.mxu0 0.0
  %254 = vmatpush1.msra.mxu0 0.0
  %255 = vmatprep.subr.mxu0 0.0
  %256 = vmatpush1.msra.mxu0 0.0
  %257 = vmatprep.subr.mxu0 0.0
  %258 = vmatpush1.msra.mxu0 0.0
  %259 = vmatprep.subr.mxu0 0.0
  %260 = vmatpush1.msra.mxu0 0.0
  %261 = vmatprep.subr.mxu0 0.0
  %262 = vmatpush1.msra.mxu0 0.0
  %263 = vmatprep.subr.mxu0 0.0
  %264 = vmatpush1.msra.mxu0 0.0
  %265 = vmatprep.subr.mxu0 0.0
  %266 = vmatpush1.msra.mxu0 0.0
  %267 = vmatprep.subr.mxu0 0.0
  %268 = vmatpush1.msra.mxu0 0.0
  %269 = vmatprep.mubr.f32.mxu0 0.0
  %270 = vmatmul.mubr.f32.gmra.mrb[0].mxu0 %v170
  %v271 = vpop.f32.mrb[0].mxu0
  %v272 = vadd.f32 0.0, %v271
  %v273 = vpop.f32.mrb[0].mxu0
  %274 = vmatprep.mubr.f32.mxu0 0.0
  %275 = vmatmul.mubr.f32.gmra.mrb[0].mxu0 %v173
  %v276 = vpop.f32.mrb[0].mxu0
  %v277 = vadd.f32 0.0, %v276
  %v278 = vpop.f32.mrb[0].mxu0
  %279 = vmatprep.mubr.f32.mxu0 0.0
  %280 = vmatmul.mubr.f32.gmra.mrb[0].mxu0 %v176
  %v281 = vpop.f32.mrb[0].mxu0
  %v282 = vadd.f32 0.0, %v281
  %v283 = vpop.f32.mrb[0].mxu0
  %284 = vmatprep.mubr.f32.mxu0 0.0
  %285 = vmatmul.mubr.f32.gmra.mrb[0].mxu0 %v179
  %v286 = vpop.f32.mrb[0].mxu0
  %v287 = vadd.f32 0.0, %v286
  %v288 = vpop.f32.mrb[0].mxu0
  %289 = vmatprep.mubr.f32.mxu0 0.0
  %290 = vmatmul.mubr.f32.gmra.mrb[0].mxu0 %v182
  %v291 = vpop.f32.mrb[0].mxu0
  %v292 = vadd.f32 0.0, %v291
  %v293 = vpop.f32.mrb[0].mxu0
  %294 = vmatprep.mubr.f32.mxu0 0.0
  %295 = vmatmul.mubr.f32.gmra.mrb[0].mxu0 %v185
  %v296 = vpop.f32.mrb[0].mxu0
  %v297 = vadd.f32 0.0, %v296
  %v298 = vpop.f32.mrb[0].mxu0
  %299 = vmatprep.mubr.f32.mxu0 0.0
  %300 = vmatmul.mubr.f32.gmra.mrb[0].mxu0 %v188
  %v301 = vpop.f32.mrb[0].mxu0
  %v302 = vadd.f32 0.0, %v301
  %v303 = vpop.f32.mrb[0].mxu0
  %304 = vmatprep.mubr.f32.mxu0 0.0
  %305 = vmatmul.mubr.f32.gmra.mrb[0].mxu0 %v191
  %v306 = vpop.f32.mrb[0].mxu0
  %v307 = vadd.f32 0.0, %v306
  %v308 = vpop.f32.mrb[0].mxu0
  %309 = vmatprep.mubr.f32.mxu0 0.0
  %310 = vmatmul.mubr.f32.gmra.mrb[0].mxu0 %v194
  %v311 = vpop.f32.mrb[0].mxu0
  %v312 = vadd.f32 0.0, %v311
  %v313 = vpop.f32.mrb[0].mxu0
  %314 = vmatprep.mubr.f32.mxu0 0.0
  %315 = vmatmul.mubr.f32.gmra.mrb[0].mxu0 %v197
  %v316 = vpop.f32.mrb[0].mxu0
  %v317 = vadd.f32 0.0, %v316
  %v318 = vpop.f32.mrb[0].mxu0
  %319 = vmatprep.mubr.f32.mxu0 0.0
  %320 = vmatmul.mubr.f32.gmra.mrb[0].mxu0 %v200
  %v321 = vpop.f32.mrb[0].mxu0
  %v322 = vadd.f32 0.0, %v321
  %v323 = vpop.f32.mrb[0].mxu0
  %324 = vmatprep.mubr.f32.mxu0 0.0
  %325 = vmatmul.mubr.f32.gmra.mrb[0].mxu0 %v203
  %v326 = vpop.f32.mrb[0].mxu0
  %v327 = vadd.f32 0.0, %v326
  %v328 = vpop.f32.mrb[0].mxu0
  %329 = vdwg.mxu0
  %330 = vst [vmem:[#allocation4] sm:$0xff] %v272
  %331 = vst [vmem:[#allocation4 + $0x18] sm:$0xff] %v277
  %332 = vst [vmem:[#allocation4 + $0x30] sm:$0xff] %v282
  %333 = vst [vmem:[#allocation4 + $0x48] sm:$0xff] %v287
  %334 = vst [vmem:[#allocation4 + $0x8] sm:$0xff] %v292
  %335 = vst [vmem:[#allocation4 + $0x20] sm:$0xff] %v297
  %336 = vst [vmem:[#allocation4 + $0x38] sm:$0xff] %v302
  %337 = vst [vmem:[#allocation4 + $0x50] sm:$0xff] %v307
  %338 = vst [vmem:[#allocation4 + $0x10] sm:$0xff] %v312
  %339 = vst [vmem:[#allocation4 + $0x28] sm:$0xff] %v317
  %340 = vst [vmem:[#allocation4 + $0x40] sm:$0xff] %v322
  %341 = vst [vmem:[#allocation4 + $0x58] sm:$0xff] %v327
  %v342 = vld [vmem:[#allocation4] sm:$0xff]
  %v343 = vld [vmem:[#allocation4 + $0x8] sm:$0xff]
  %v344 = vld [vmem:[#allocation4 + $0x10] sm:$0xff]
  %v345 = vld [vmem:[#allocation4 + $0x18] sm:$0xff]
  %v346 = vld [vmem:[#allocation4 + $0x20] sm:$0xff]
  %v347 = vld [vmem:[#allocation4 + $0x28] sm:$0xff]
  %v348 = vld [vmem:[#allocation4 + $0x30] sm:$0xff]
  %v349 = vld [vmem:[#allocation4 + $0x38] sm:$0xff]
  %v350 = vld [vmem:[#allocation4 + $0x40] sm:$0xff]
  %v351 = vld [vmem:[#allocation4 + $0x48] sm:$0xff]
  %v352 = vld [vmem:[#allocation4 + $0x50] sm:$0xff]
  %v353 = vld [vmem:[#allocation4 + $0x58] sm:$0xff]
  %v355 = vlaneseq
  %v356 = vshrl.u32 %v355, 7
  %v357 = vsub.s32 0, %v356
  %v358 = vrot.slane %v121, %v357
  %360 = vmatprep.subr.mxu0 0.0
  %361 = vmatpush1.msra.mxu0 %v73
  %362 = vmatprep.subr.mxu0 0.0
  %363 = vmatpush1.msra.mxu0 %v74
  %364 = vmatprep.subr.mxu0 0.0
  %365 = vmatpush1.msra.mxu0 %v75
  %366 = vmatprep.subr.mxu0 0.0
  %367 = vmatpush1.msra.mxu0 %v76
  %368 = vmatprep.subr.mxu0 0.0
  %369 = vmatpush1.msra.mxu0 %v77
  %370 = vmatprep.subr.mxu0 0.0
  %371 = vmatpush1.msra.mxu0 %v78
  %372 = vmatprep.subr.mxu0 0.0
  %373 = vmatpush1.msra.mxu0 %v79
  %374 = vmatprep.subr.mxu0 0.0
  %375 = vmatpush1.msra.mxu0 %v80
  %376 = vmatprep.subr.mxu0 0.0
  %377 = vmatpush1.msra.mxu0 %v81
  %378 = vmatprep.subr.mxu0 0.0
  %379 = vmatpush1.msra.mxu0 %v82
  %380 = vmatprep.subr.mxu0 0.0
  %381 = vmatpush1.msra.mxu0 %v83
  %382 = vmatprep.subr.mxu0 0.0
  %383 = vmatpush1.msra.mxu0 %v84
  %384 = vmatprep.subr.mxu0 0.0
  %385 = vmatpush1.msra.mxu0 %v85
  %386 = vmatprep.subr.mxu0 0.0
  %387 = vmatpush1.msra.mxu0 %v86
  %388 = vmatprep.subr.mxu0 0.0
  %389 = vmatpush1.msra.mxu0 %v87
  %390 = vmatprep.subr.mxu0 0.0
  %391 = vmatpush1.msra.mxu0 %v88
  %392 = vmatprep.subr.mxu0 0.0
  %393 = vmatpush1.msra.mxu0 %v89
  %394 = vmatprep.subr.mxu0 0.0
  %395 = vmatpush1.msra.mxu0 %v90
  %396 = vmatprep.subr.mxu0 0.0
  %397 = vmatpush1.msra.mxu0 %v91
  %398 = vmatprep.subr.mxu0 0.0
  %399 = vmatpush1.msra.mxu0 %v92
  %400 = vmatprep.subr.mxu0 0.0
  %401 = vmatpush1.msra.mxu0 %v93
  %402 = vmatprep.subr.mxu0 0.0
  %403 = vmatpush1.msra.mxu0 %v94
  %404 = vmatprep.subr.mxu0 0.0
  %405 = vmatpush1.msra.mxu0 %v95
  %406 = vmatprep.subr.mxu0 0.0
  %407 = vmatpush1.msra.mxu0 %v96
  %408 = vmatprep.subr.mxu0 0.0
  %409 = vmatpush1.msra.mxu0 %v97
  %410 = vmatprep.subr.mxu0 0.0
  %411 = vmatpush1.msra.mxu0 %v98
  %412 = vmatprep.subr.mxu0 0.0
  %413 = vmatpush1.msra.mxu0 %v99
  %414 = vmatprep.subr.mxu0 0.0
  %415 = vmatpush1.msra.mxu0 %v100
  %416 = vmatprep.subr.mxu0 0.0
  %417 = vmatpush1.msra.mxu0 %v101
  %418 = vmatprep.subr.mxu0 0.0
  %419 = vmatpush1.msra.mxu0 %v102
  %420 = vmatprep.subr.mxu0 0.0
  %421 = vmatpush1.msra.mxu0 %v103
  %422 = vmatprep.subr.mxu0 0.0
  %423 = vmatpush1.msra.mxu0 %v104
  %424 = vmatprep.mubr.f32.mxu0 %v343
  %425 = vmatmul.mubr.f32.gmra.mrb[0].mxu0 %v342
  %v426 = vpop.f32.mrb[0].mxu0
  %v427 = vadd.f32 %v358, %v426
  %v428 = vpop.f32.mrb[0].mxu0
  %429 = vmatprep.mubr.f32.mxu0 %v346
  %430 = vmatmul.mubr.f32.gmra.mrb[0].mxu0 %v345
  %v431 = vpop.f32.mrb[0].mxu0
  %v432 = vadd.f32 %v358, %v431
  %v433 = vpop.f32.mrb[0].mxu0
  %434 = vmatprep.mubr.f32.mxu0 %v349
  %435 = vmatmul.mubr.f32.gmra.mrb[0].mxu0 %v348
  %v436 = vpop.f32.mrb[0].mxu0
  %v437 = vadd.f32 %v358, %v436
  %v438 = vpop.f32.mrb[0].mxu0
  %439 = vmatprep.mubr.f32.mxu0 %v352
  %440 = vmatmul.mubr.f32.gmra.mrb[0].mxu0 %v351
  %v441 = vpop.f32.mrb[0].mxu0
  %v442 = vadd.f32 %v358, %v441
  %v443 = vpop.f32.mrb[0].mxu0
  %444 = vdwg.mxu0
  %445 = vmatprep.subr.mxu0 0.0
  %446 = vmatpush1.msra.mxu0 %v105
  %447 = vmatprep.subr.mxu0 0.0
  %448 = vmatpush1.msra.mxu0 %v106
  %449 = vmatprep.subr.mxu0 0.0
  %450 = vmatpush1.msra.mxu0 %v107
  %451 = vmatprep.subr.mxu0 0.0
  %452 = vmatpush1.msra.mxu0 %v108
  %453 = vmatprep.subr.mxu0 0.0
  %454 = vmatpush1.msra.mxu0 %v109
  %455 = vmatprep.subr.mxu0 0.0
  %456 = vmatpush1.msra.mxu0 %v110
  %457 = vmatprep.subr.mxu0 0.0
  %458 = vmatpush1.msra.mxu0 %v111
  %459 = vmatprep.subr.mxu0 0.0
  %460 = vmatpush1.msra.mxu0 %v112
  %461 = vmatprep.subr.mxu0 0.0
  %462 = vmatpush1.msra.mxu0 %v113
  %463 = vmatprep.subr.mxu0 0.0
  %464 = vmatpush1.msra.mxu0 %v114
  %465 = vmatprep.subr.mxu0 0.0
  %466 = vmatpush1.msra.mxu0 %v115
  %467 = vmatprep.subr.mxu0 0.0
  %468 = vmatpush1.msra.mxu0 %v116
  %469 = vmatprep.subr.mxu0 0.0
  %470 = vmatpush1.msra.mxu0 %v117
  %471 = vmatprep.subr.mxu0 0.0
  %472 = vmatpush1.msra.mxu0 %v118
  %473 = vmatprep.subr.mxu0 0.0
  %474 = vmatpush1.msra.mxu0 %v119
  %475 = vmatprep.subr.mxu0 0.0
  %476 = vmatpush1.msra.mxu0 %v120
  %477 = vmatprep.subr.mxu0 0.0
  %478 = vmatpush1.msra.mxu0 0.0
  %479 = vmatprep.subr.mxu0 0.0
  %480 = vmatpush1.msra.mxu0 0.0
  %481 = vmatprep.subr.mxu0 0.0
  %482 = vmatpush1.msra.mxu0 0.0
  %483 = vmatprep.subr.mxu0 0.0
  %484 = vmatpush1.msra.mxu0 0.0
  %485 = vmatprep.subr.mxu0 0.0
  %486 = vmatpush1.msra.mxu0 0.0
  %487 = vmatprep.subr.mxu0 0.0
  %488 = vmatpush1.msra.mxu0 0.0
  %489 = vmatprep.subr.mxu0 0.0
  %490 = vmatpush1.msra.mxu0 0.0
  %491 = vmatprep.subr.mxu0 0.0
  %492 = vmatpush1.msra.mxu0 0.0
  %493 = vmatprep.subr.mxu0 0.0
  %494 = vmatpush1.msra.mxu0 0.0
  %495 = vmatprep.subr.mxu0 0.0
  %496 = vmatpush1.msra.mxu0 0.0
  %497 = vmatprep.subr.mxu0 0.0
  %498 = vmatpush1.msra.mxu0 0.0
  %499 = vmatprep.subr.mxu0 0.0
  %500 = vmatpush1.msra.mxu0 0.0
  %501 = vmatprep.subr.mxu0 0.0
  %502 = vmatpush1.msra.mxu0 0.0
  %503 = vmatprep.subr.mxu0 0.0
  %504 = vmatpush1.msra.mxu0 0.0
  %505 = vmatprep.subr.mxu0 0.0
  %506 = vmatpush1.msra.mxu0 0.0
  %507 = vmatprep.subr.mxu0 0.0
  %508 = vmatpush1.msra.mxu0 0.0
  %509 = vmatprep.mubr.f32.mxu0 0.0
  %510 = vmatmul.mubr.f32.gmra.mrb[0].mxu0 %v344
  %v511 = vpop.f32.mrb[0].mxu0
  %v512 = vadd.f32 %v427, %v511
  %v513 = vpop.f32.mrb[0].mxu0
  %514 = vmatprep.mubr.f32.mxu0 0.0
  %515 = vmatmul.mubr.f32.gmra.mrb[0].mxu0 %v347
  %v516 = vpop.f32.mrb[0].mxu0
  %v517 = vadd.f32 %v432, %v516
  %v518 = vpop.f32.mrb[0].mxu0
  %519 = vmatprep.mubr.f32.mxu0 0.0
  %520 = vmatmul.mubr.f32.gmra.mrb[0].mxu0 %v350
  %v521 = vpop.f32.mrb[0].mxu0
  %v522 = vadd.f32 %v437, %v521
  %v523 = vpop.f32.mrb[0].mxu0
  %524 = vmatprep.mubr.f32.mxu0 0.0
  %525 = vmatmul.mubr.f32.gmra.mrb[0].mxu0 %v353
  %v526 = vpop.f32.mrb[0].mxu0
  %v527 = vadd.f32 %v442, %v526
  %v528 = vpop.f32.mrb[0].mxu0
  %529 = vdwg.mxu0
  %v530 = vxor.u32 %v512, 2147483648
  %v531 = vxor.u32 %v517, 2147483648
  %v532 = vxor.u32 %v522, 2147483648
  %v533 = vxor.u32 %v527, 2147483648
  %v534 = vmul.f32 %v530, 1.442695
  %v535 = vpow.pop %v534
  %v536 = vmul.f32 %v531, 1.442695
  %v537 = vpow.pop %v536
  %v538 = vmul.f32 %v532, 1.442695
  %v539 = vpow.pop %v538
  %v540 = vmul.f32 %v533, 1.442695
  %v541 = vpow.pop %v540
  %v542 = vadd.f32 %v535, 1.0
  %v543 = vadd.f32 %v537, 1.0
  %v544 = vadd.f32 %v539, 1.0
  %v545 = vadd.f32 %v541, 1.0
  %v546 = vrcp.pop %v542
  %v547 = vmul.f32 1.0, %v546
  %v548 = vrcp.pop %v543
  %v549 = vmul.f32 1.0, %v548
  %v550 = vrcp.pop %v544
  %v551 = vmul.f32 1.0, %v550
  %v552 = vrcp.pop %v545
  %v553 = vmul.f32 1.0, %v552
  %v554 = vmul.f32 %v547, %v134
  %v555 = vmul.f32 %v549, %v135
  %v556 = vmul.f32 %v551, %v136
  %v557 = vmul.f32 %v553, %v137
  %558 = vmatprep.subr.mxu0 0.0
  %559 = vmatpush1.msra.mxu0 %v554
  %560 = vmatprep.subr.mxu0 0.0
  %561 = vmatpush1.msra.mxu0 %v555
  %562 = vmatprep.subr.mxu0 0.0
  %563 = vmatpush1.msra.mxu0 %v556
  %564 = vmatprep.subr.mxu0 0.0
  %565 = vmatpush1.msra.mxu0 %v557
  %566 = vmatprep.subr.mxu0 0.0
  %567 = vmatpush1.msra.mxu0 0.0
  %568 = vmatprep.subr.mxu0 0.0
  %569 = vmatpush1.msra.mxu0 0.0
  %570 = vmatprep.subr.mxu0 0.0
  %571 = vmatpush1.msra.mxu0 0.0
  %572 = vmatprep.subr.mxu0 0.0
  %573 = vmatpush1.msra.mxu0 0.0
  %574 = vmatprep.subr.mxu0 0.0
  %575 = vmatpush1.msra.mxu0 0.0
  %576 = vmatprep.subr.mxu0 0.0
  %577 = vmatpush1.msra.mxu0 0.0
  %578 = vmatprep.subr.mxu0 0.0
  %579 = vmatpush1.msra.mxu0 0.0
  %580 = vmatprep.subr.mxu0 0.0
  %581 = vmatpush1.msra.mxu0 0.0
  %582 = vmatprep.subr.mxu0 0.0
  %583 = vmatpush1.msra.mxu0 0.0
  %584 = vmatprep.subr.mxu0 0.0
  %585 = vmatpush1.msra.mxu0 0.0
  %586 = vmatprep.subr.mxu0 0.0
  %587 = vmatpush1.msra.mxu0 0.0
  %588 = vmatprep.subr.mxu0 0.0
  %589 = vmatpush1.msra.mxu0 0.0
  %590 = vmatprep.subr.mxu0 0.0
  %591 = vmatpush1.msra.mxu0 0.0
  %592 = vmatprep.subr.mxu0 0.0
  %593 = vmatpush1.msra.mxu0 0.0
  %594 = vmatprep.subr.mxu0 0.0
  %595 = vmatpush1.msra.mxu0 0.0
  %596 = vmatprep.subr.mxu0 0.0
  %597 = vmatpush1.msra.mxu0 0.0
  %598 = vmatprep.subr.mxu0 0.0
  %599 = vmatpush1.msra.mxu0 0.0
  %600 = vmatprep.subr.mxu0 0.0
  %601 = vmatpush1.msra.mxu0 0.0
  %602 = vmatprep.subr.mxu0 0.0
  %603 = vmatpush1.msra.mxu0 0.0
  %604 = vmatprep.subr.mxu0 0.0
  %605 = vmatpush1.msra.mxu0 0.0
  %606 = vmatprep.subr.mxu0 0.0
  %607 = vmatpush1.msra.mxu0 0.0
  %608 = vmatprep.subr.mxu0 0.0
  %609 = vmatpush1.msra.mxu0 0.0
  %610 = vmatprep.subr.mxu0 0.0
  %611 = vmatpush1.msra.mxu0 0.0
  %612 = vmatprep.subr.mxu0 0.0
  %613 = vmatpush1.msra.mxu0 0.0
  %614 = vmatprep.subr.mxu0 0.0
  %615 = vmatpush1.msra.mxu0 0.0
  %616 = vmatprep.subr.mxu0 0.0
  %617 = vmatpush1.msra.mxu0 0.0
  %618 = vmatprep.subr.mxu0 0.0
  %619 = vmatpush1.msra.mxu0 0.0
  %620 = vmatprep.subr.mxu0 0.0
  %621 = vmatpush1.msra.mxu0 0.0
  %622 = vmatprep.mubr.f32.mxu0 0.0
  %623 = vmatmul.mubr.f32.gmra.mrb[0].mxu0 %v170
  %v624 = vpop.f32.mrb[0].mxu0
  %v625 = vadd.f32 0.0, %v624
  %v626 = vpop.f32.mrb[0].mxu0
  %627 = vmatprep.mubr.f32.mxu0 0.0
  %628 = vmatmul.mubr.f32.gmra.mrb[0].mxu0 %v173
  %v629 = vpop.f32.mrb[0].mxu0
  %v630 = vadd.f32 0.0, %v629
  %v631 = vpop.f32.mrb[0].mxu0
  %632 = vmatprep.mubr.f32.mxu0 0.0
  %633 = vmatmul.mubr.f32.gmra.mrb[0].mxu0 %v176
  %v634 = vpop.f32.mrb[0].mxu0
  %v635 = vadd.f32 0.0, %v634
  %v636 = vpop.f32.mrb[0].mxu0
  %637 = vmatprep.mubr.f32.mxu0 0.0
  %638 = vmatmul.mubr.f32.gmra.mrb[0].mxu0 %v179
  %v639 = vpop.f32.mrb[0].mxu0
  %v640 = vadd.f32 0.0, %v639
  %v641 = vpop.f32.mrb[0].mxu0
  %642 = vmatprep.mubr.f32.mxu0 0.0
  %643 = vmatmul.mubr.f32.gmra.mrb[0].mxu0 %v182
  %v644 = vpop.f32.mrb[0].mxu0
  %v645 = vadd.f32 0.0, %v644
  %v646 = vpop.f32.mrb[0].mxu0
  %647 = vmatprep.mubr.f32.mxu0 0.0
  %648 = vmatmul.mubr.f32.gmra.mrb[0].mxu0 %v185
  %v649 = vpop.f32.mrb[0].mxu0
  %v650 = vadd.f32 0.0, %v649
  %v651 = vpop.f32.mrb[0].mxu0
  %652 = vmatprep.mubr.f32.mxu0 0.0
  %653 = vmatmul.mubr.f32.gmra.mrb[0].mxu0 %v188
  %v654 = vpop.f32.mrb[0].mxu0
  %v655 = vadd.f32 0.0, %v654
  %v656 = vpop.f32.mrb[0].mxu0
  %657 = vmatprep.mubr.f32.mxu0 0.0
  %658 = vmatmul.mubr.f32.gmra.mrb[0].mxu0 %v191
  %v659 = vpop.f32.mrb[0].mxu0
  %v660 = vadd.f32 0.0, %v659
  %v661 = vpop.f32.mrb[0].mxu0
  %662 = vmatprep.mubr.f32.mxu0 0.0
  %663 = vmatmul.mubr.f32.gmra.mrb[0].mxu0 %v194
  %v664 = vpop.f32.mrb[0].mxu0
  %v665 = vadd.f32 0.0, %v664
  %v666 = vpop.f32.mrb[0].mxu0
  %667 = vmatprep.mubr.f32.mxu0 0.0
  %668 = vmatmul.mubr.f32.gmra.mrb[0].mxu0 %v197
  %v669 = vpop.f32.mrb[0].mxu0
  %v670 = vadd.f32 0.0, %v669
  %v671 = vpop.f32.mrb[0].mxu0
  %672 = vmatprep.mubr.f32.mxu0 0.0
  %673 = vmatmul.mubr.f32.gmra.mrb[0].mxu0 %v200
  %v674 = vpop.f32.mrb[0].mxu0
  %v675 = vadd.f32 0.0, %v674
  %v676 = vpop.f32.mrb[0].mxu0
  %677 = vmatprep.mubr.f32.mxu0 0.0
  %678 = vmatmul.mubr.f32.gmra.mrb[0].mxu0 %v203
  %v679 = vpop.f32.mrb[0].mxu0
  %v680 = vadd.f32 0.0, %v679
  %v681 = vpop.f32.mrb[0].mxu0
  %682 = vdwg.mxu0
  %v684 = vsel %vm168, %v625, 0
  %v687 = vsel %vm168, %v630, 0
  %v690 = vsel %vm168, %v635, 0
  %v693 = vsel %vm168, %v640, 0
  %695 = vmatprep.subr.mxu0 0.0
  %696 = vmatpush1.msra.mxu0 %v122
  %697 = vmatprep.subr.mxu0 0.0
  %698 = vmatpush1.msra.mxu0 %v123
  %699 = vmatprep.subr.mxu0 0.0
  %700 = vmatpush1.msra.mxu0 %v124
  %701 = vmatprep.subr.mxu0 0.0
  %702 = vmatpush1.msra.mxu0 %v125
  %703 = vmatprep.subr.mxu0 0.0
  %704 = vmatpush1.msra.mxu0 0.0
  %705 = vmatprep.subr.mxu0 0.0
  %706 = vmatpush1.msra.mxu0 0.0
  %707 = vmatprep.subr.mxu0 0.0
  %708 = vmatpush1.msra.mxu0 0.0
  %709 = vmatprep.subr.mxu0 0.0
  %710 = vmatpush1.msra.mxu0 0.0
  %711 = vmatprep.subr.mxu0 0.0
  %712 = vmatpush1.msra.mxu0 0.0
  %713 = vmatprep.subr.mxu0 0.0
  %714 = vmatpush1.msra.mxu0 0.0
  %715 = vmatprep.subr.mxu0 0.0
  %716 = vmatpush1.msra.mxu0 0.0
  %717 = vmatprep.subr.mxu0 0.0
  %718 = vmatpush1.msra.mxu0 0.0
  %719 = vmatprep.subr.mxu0 0.0
  %720 = vmatpush1.msra.mxu0 0.0
  %721 = vmatprep.subr.mxu0 0.0
  %722 = vmatpush1.msra.mxu0 0.0
  %723 = vmatprep.subr.mxu0 0.0
  %724 = vmatpush1.msra.mxu0 0.0
  %725 = vmatprep.subr.mxu0 0.0
  %726 = vmatpush1.msra.mxu0 0.0
  %727 = vmatprep.subr.mxu0 0.0
  %728 = vmatpush1.msra.mxu0 0.0
  %729 = vmatprep.subr.mxu0 0.0
  %730 = vmatpush1.msra.mxu0 0.0
  %731 = vmatprep.subr.mxu0 0.0
  %732 = vmatpush1.msra.mxu0 0.0
  %733 = vmatprep.subr.mxu0 0.0
  %734 = vmatpush1.msra.mxu0 0.0
  %735 = vmatprep.subr.mxu0 0.0
  %736 = vmatpush1.msra.mxu0 0.0
  %737 = vmatprep.subr.mxu0 0.0
  %738 = vmatpush1.msra.mxu0 0.0
  %739 = vmatprep.subr.mxu0 0.0
  %740 = vmatpush1.msra.mxu0 0.0
  %741 = vmatprep.subr.mxu0 0.0
  %742 = vmatpush1.msra.mxu0 0.0
  %743 = vmatprep.subr.mxu0 0.0
  %744 = vmatpush1.msra.mxu0 0.0
  %745 = vmatprep.subr.mxu0 0.0
  %746 = vmatpush1.msra.mxu0 0.0
  %747 = vmatprep.subr.mxu0 0.0
  %748 = vmatpush1.msra.mxu0 0.0
  %749 = vmatprep.subr.mxu0 0.0
  %750 = vmatpush1.msra.mxu0 0.0
  %751 = vmatprep.subr.mxu0 0.0
  %752 = vmatpush1.msra.mxu0 0.0
  %753 = vmatprep.subr.mxu0 0.0
  %754 = vmatpush1.msra.mxu0 0.0
  %755 = vmatprep.subr.mxu0 0.0
  %756 = vmatpush1.msra.mxu0 0.0
  %757 = vmatprep.subr.mxu0 0.0
  %758 = vmatpush1.msra.mxu0 0.0
  %759 = vmatprep.mubr.f32.mxu0 0.0
  %760 = vmatmul.mubr.f32.gmra.mrb[0].mxu0 %v684
  %v761 = vpop.f32.mrb[0].mxu0
  %v762 = vadd.f32 0.0, %v761
  %v763 = vpop.f32.mrb[0].mxu0
  %764 = vmatprep.mubr.f32.mxu0 0.0
  %765 = vmatmul.mubr.f32.gmra.mrb[0].mxu0 %v687
  %v766 = vpop.f32.mrb[0].mxu0
  %v767 = vadd.f32 0.0, %v766
  %v768 = vpop.f32.mrb[0].mxu0
  %769 = vmatprep.mubr.f32.mxu0 0.0
  %770 = vmatmul.mubr.f32.gmra.mrb[0].mxu0 %v690
  %v771 = vpop.f32.mrb[0].mxu0
  %v772 = vadd.f32 0.0, %v771
  %v773 = vpop.f32.mrb[0].mxu0
  %774 = vmatprep.mubr.f32.mxu0 0.0
  %775 = vmatmul.mubr.f32.gmra.mrb[0].mxu0 %v693
  %v776 = vpop.f32.mrb[0].mxu0
  %v777 = vadd.f32 0.0, %v776
  %v778 = vpop.f32.mrb[0].mxu0
  %779 = vdwg.mxu0
  %784 = vrot.lane.b32.xlu0 %v762, 64
  %v785 = vpop.permute.xlu0 %784
  %786 = vrot.lane.b32.xlu0 %v767, 64
  %v787 = vpop.permute.xlu0 %786
  %788 = vrot.lane.b32.xlu0 %v772, 64
  %v789 = vpop.permute.xlu0 %788
  %790 = vrot.lane.b32.xlu0 %v777, 64
  %v791 = vpop.permute.xlu0 %790
  %v796 = vadd.f32 %v512, %v785
  %v797 = vadd.f32 %v517, %v787
  %v798 = vadd.f32 %v522, %v789
  %v799 = vadd.f32 %v527, %v791
  %v801 = vsel %vm168, %v645, 0
  %v804 = vsel %vm168, %v650, 0
  %v807 = vsel %vm168, %v655, 0
  %v810 = vsel %vm168, %v660, 0
  %812 = vmatprep.subr.mxu0 0.0
  %813 = vmatpush1.msra.mxu0 %v126
  %814 = vmatprep.subr.mxu0 0.0
  %815 = vmatpush1.msra.mxu0 %v127
  %816 = vmatprep.subr.mxu0 0.0
  %817 = vmatpush1.msra.mxu0 %v128
  %818 = vmatprep.subr.mxu0 0.0
  %819 = vmatpush1.msra.mxu0 %v129
  %820 = vmatprep.subr.mxu0 0.0
  %821 = vmatpush1.msra.mxu0 0.0
  %822 = vmatprep.subr.mxu0 0.0
  %823 = vmatpush1.msra.mxu0 0.0
  %824 = vmatprep.subr.mxu0 0.0
  %825 = vmatpush1.msra.mxu0 0.0
  %826 = vmatprep.subr.mxu0 0.0
  %827 = vmatpush1.msra.mxu0 0.0
  %828 = vmatprep.subr.mxu0 0.0
  %829 = vmatpush1.msra.mxu0 0.0
  %830 = vmatprep.subr.mxu0 0.0
  %831 = vmatpush1.msra.mxu0 0.0
  %832 = vmatprep.subr.mxu0 0.0
  %833 = vmatpush1.msra.mxu0 0.0
  %834 = vmatprep.subr.mxu0 0.0
  %835 = vmatpush1.msra.mxu0 0.0
  %836 = vmatprep.subr.mxu0 0.0
  %837 = vmatpush1.msra.mxu0 0.0
  %838 = vmatprep.subr.mxu0 0.0
  %839 = vmatpush1.msra.mxu0 0.0
  %840 = vmatprep.subr.mxu0 0.0
  %841 = vmatpush1.msra.mxu0 0.0
  %842 = vmatprep.subr.mxu0 0.0
  %843 = vmatpush1.msra.mxu0 0.0
  %844 = vmatprep.subr.mxu0 0.0
  %845 = vmatpush1.msra.mxu0 0.0
  %846 = vmatprep.subr.mxu0 0.0
  %847 = vmatpush1.msra.mxu0 0.0
  %848 = vmatprep.subr.mxu0 0.0
  %849 = vmatpush1.msra.mxu0 0.0
  %850 = vmatprep.subr.mxu0 0.0
  %851 = vmatpush1.msra.mxu0 0.0
  %852 = vmatprep.subr.mxu0 0.0
  %853 = vmatpush1.msra.mxu0 0.0
  %854 = vmatprep.subr.mxu0 0.0
  %855 = vmatpush1.msra.mxu0 0.0
  %856 = vmatprep.subr.mxu0 0.0
  %857 = vmatpush1.msra.mxu0 0.0
  %858 = vmatprep.subr.mxu0 0.0
  %859 = vmatpush1.msra.mxu0 0.0
  %860 = vmatprep.subr.mxu0 0.0
  %861 = vmatpush1.msra.mxu0 0.0
  %862 = vmatprep.subr.mxu0 0.0
  %863 = vmatpush1.msra.mxu0 0.0
  %864 = vmatprep.subr.mxu0 0.0
  %865 = vmatpush1.msra.mxu0 0.0
  %866 = vmatprep.subr.mxu0 0.0
  %867 = vmatpush1.msra.mxu0 0.0
  %868 = vmatprep.subr.mxu0 0.0
  %869 = vmatpush1.msra.mxu0 0.0
  %870 = vmatprep.subr.mxu0 0.0
  %871 = vmatpush1.msra.mxu0 0.0
  %872 = vmatprep.subr.mxu0 0.0
  %873 = vmatpush1.msra.mxu0 0.0
  %874 = vmatprep.subr.mxu0 0.0
  %875 = vmatpush1.msra.mxu0 0.0
  %876 = vmatprep.mubr.f32.mxu0 0.0
  %877 = vmatmul.mubr.f32.gmra.mrb[0].mxu0 %v801
  %v878 = vpop.f32.mrb[0].mxu0
  %v879 = vadd.f32 0.0, %v878
  %v880 = vpop.f32.mrb[0].mxu0
  %881 = vmatprep.mubr.f32.mxu0 0.0
  %882 = vmatmul.mubr.f32.gmra.mrb[0].mxu0 %v804
  %v883 = vpop.f32.mrb[0].mxu0
  %v884 = vadd.f32 0.0, %v883
  %v885 = vpop.f32.mrb[0].mxu0
  %886 = vmatprep.mubr.f32.mxu0 0.0
  %887 = vmatmul.mubr.f32.gmra.mrb[0].mxu0 %v807
  %v888 = vpop.f32.mrb[0].mxu0
  %v889 = vadd.f32 0.0, %v888
  %v890 = vpop.f32.mrb[0].mxu0
  %891 = vmatprep.mubr.f32.mxu0 0.0
  %892 = vmatmul.mubr.f32.gmra.mrb[0].mxu0 %v810
  %v893 = vpop.f32.mrb[0].mxu0
  %v894 = vadd.f32 0.0, %v893
  %v895 = vpop.f32.mrb[0].mxu0
  %896 = vdwg.mxu0
  %901 = vrot.lane.b32.xlu0 %v879, 64
  %v902 = vpop.permute.xlu0 %901
  %903 = vrot.lane.b32.xlu0 %v884, 64
  %v904 = vpop.permute.xlu0 %903
  %905 = vrot.lane.b32.xlu0 %v889, 64
  %v906 = vpop.permute.xlu0 %905
  %907 = vrot.lane.b32.xlu0 %v894, 64
  %v908 = vpop.permute.xlu0 %907
  %v913 = vadd.f32 %v796, %v902
  %v914 = vadd.f32 %v797, %v904
  %v915 = vadd.f32 %v798, %v906
  %v916 = vadd.f32 %v799, %v908
  %v918 = vsel %vm168, %v665, 0
  %v921 = vsel %vm168, %v670, 0
  %v924 = vsel %vm168, %v675, 0
  %v927 = vsel %vm168, %v680, 0
  %929 = vmatprep.subr.mxu0 0.0
  %930 = vmatpush1.msra.mxu0 %v130
  %931 = vmatprep.subr.mxu0 0.0
  %932 = vmatpush1.msra.mxu0 %v131
  %933 = vmatprep.subr.mxu0 0.0
  %934 = vmatpush1.msra.mxu0 %v132
  %935 = vmatprep.subr.mxu0 0.0
  %936 = vmatpush1.msra.mxu0 %v133
  %937 = vmatprep.subr.mxu0 0.0
  %938 = vmatpush1.msra.mxu0 0.0
  %939 = vmatprep.subr.mxu0 0.0
  %940 = vmatpush1.msra.mxu0 0.0
  %941 = vmatprep.subr.mxu0 0.0
  %942 = vmatpush1.msra.mxu0 0.0
  %943 = vmatprep.subr.mxu0 0.0
  %944 = vmatpush1.msra.mxu0 0.0
  %945 = vmatprep.subr.mxu0 0.0
  %946 = vmatpush1.msra.mxu0 0.0
  %947 = vmatprep.subr.mxu0 0.0
  %948 = vmatpush1.msra.mxu0 0.0
  %949 = vmatprep.subr.mxu0 0.0
  %950 = vmatpush1.msra.mxu0 0.0
  %951 = vmatprep.subr.mxu0 0.0
  %952 = vmatpush1.msra.mxu0 0.0
  %953 = vmatprep.subr.mxu0 0.0
  %954 = vmatpush1.msra.mxu0 0.0
  %955 = vmatprep.subr.mxu0 0.0
  %956 = vmatpush1.msra.mxu0 0.0
  %957 = vmatprep.subr.mxu0 0.0
  %958 = vmatpush1.msra.mxu0 0.0
  %959 = vmatprep.subr.mxu0 0.0
  %960 = vmatpush1.msra.mxu0 0.0
  %961 = vmatprep.subr.mxu0 0.0
  %962 = vmatpush1.msra.mxu0 0.0
  %963 = vmatprep.subr.mxu0 0.0
  %964 = vmatpush1.msra.mxu0 0.0
  %965 = vmatprep.subr.mxu0 0.0
  %966 = vmatpush1.msra.mxu0 0.0
  %967 = vmatprep.subr.mxu0 0.0
  %968 = vmatpush1.msra.mxu0 0.0
  %969 = vmatprep.subr.mxu0 0.0
  %970 = vmatpush1.msra.mxu0 0.0
  %971 = vmatprep.subr.mxu0 0.0
  %972 = vmatpush1.msra.mxu0 0.0
  %973 = vmatprep.subr.mxu0 0.0
  %974 = vmatpush1.msra.mxu0 0.0
  %975 = vmatprep.subr.mxu0 0.0
  %976 = vmatpush1.msra.mxu0 0.0
  %977 = vmatprep.subr.mxu0 0.0
  %978 = vmatpush1.msra.mxu0 0.0
  %979 = vmatprep.subr.mxu0 0.0
  %980 = vmatpush1.msra.mxu0 0.0
  %981 = vmatprep.subr.mxu0 0.0
  %982 = vmatpush1.msra.mxu0 0.0
  %983 = vmatprep.subr.mxu0 0.0
  %984 = vmatpush1.msra.mxu0 0.0
  %985 = vmatprep.subr.mxu0 0.0
  %986 = vmatpush1.msra.mxu0 0.0
  %987 = vmatprep.subr.mxu0 0.0
  %988 = vmatpush1.msra.mxu0 0.0
  %989 = vmatprep.subr.mxu0 0.0
  %990 = vmatpush1.msra.mxu0 0.0
  %991 = vmatprep.subr.mxu0 0.0
  %992 = vmatpush1.msra.mxu0 0.0
  %993 = vmatprep.mubr.f32.mxu0 0.0
  %994 = vmatmul.mubr.f32.gmra.mrb[0].mxu0 %v918
  %v995 = vpop.f32.mrb[0].mxu0
  %v996 = vadd.f32 0.0, %v995
  %v997 = vpop.f32.mrb[0].mxu0
  %998 = vmatprep.mubr.f32.mxu0 0.0
  %999 = vmatmul.mubr.f32.gmra.mrb[0].mxu0 %v921
  %v1000 = vpop.f32.mrb[0].mxu0
  %v1001 = vadd.f32 0.0, %v1000
  %v1002 = vpop.f32.mrb[0].mxu0
  %1003 = vmatprep.mubr.f32.mxu0 0.0
  %1004 = vmatmul.mubr.f32.gmra.mrb[0].mxu0 %v924
  %v1005 = vpop.f32.mrb[0].mxu0
  %v1006 = vadd.f32 0.0, %v1005
  %v1007 = vpop.f32.mrb[0].mxu0
  %1008 = vmatprep.mubr.f32.mxu0 0.0
  %1009 = vmatmul.mubr.f32.gmra.mrb[0].mxu0 %v927
  %v1010 = vpop.f32.mrb[0].mxu0
  %v1011 = vadd.f32 0.0, %v1010
  %v1012 = vpop.f32.mrb[0].mxu0
  %1013 = vdwg.mxu0
  %1018 = vrot.lane.b32.xlu0 %v996, 64
  %v1019 = vpop.permute.xlu0 %1018
  %1020 = vrot.lane.b32.xlu0 %v1001, 64
  %v1021 = vpop.permute.xlu0 %1020
  %1022 = vrot.lane.b32.xlu0 %v1006, 64
  %v1023 = vpop.permute.xlu0 %1022
  %1024 = vrot.lane.b32.xlu0 %v1011, 64
  %v1025 = vpop.permute.xlu0 %1024
  %v1030 = vadd.f32 %v913, %v1019
  %v1031 = vadd.f32 %v914, %v1021
  %v1032 = vadd.f32 %v915, %v1023
  %v1033 = vadd.f32 %v916, %v1025
  %v1034 = vtanh.pop %v1030
  %v1035 = vtanh.pop %v1031
  %v1036 = vtanh.pop %v1032
  %v1037 = vtanh.pop %v1033
  %1038 = vrot.lane.b32.xlu0 %v134, 32
  %v1039 = vpop.permute.xlu0 %1038
  %1040 = vrot.lane.b32.xlu0 %v135, 32
  %v1041 = vpop.permute.xlu0 %1040
  %1042 = vrot.lane.b32.xlu0 %v136, 32
  %v1043 = vpop.permute.xlu0 %1042
  %1044 = vrot.lane.b32.xlu0 %v137, 32
  %v1045 = vpop.permute.xlu0 %1044
  %v1050 = vmul.f32 %v547, %v1039
  %v1051 = vmul.f32 %v549, %v1041
  %v1052 = vmul.f32 %v551, %v1043
  %v1053 = vmul.f32 %v553, %v1045
  %v1054 = vsub.f32 1.0, %v547
  %v1055 = vsub.f32 1.0, %v549
  %v1056 = vsub.f32 1.0, %v551
  %v1057 = vsub.f32 1.0, %v553
  %1062 = vrot.lane.b32.xlu0 %v1034, 96
  %v1063 = vpop.permute.xlu0 %1062
  %1064 = vrot.lane.b32.xlu0 %v1035, 96
  %v1065 = vpop.permute.xlu0 %1064
  %1066 = vrot.lane.b32.xlu0 %v1036, 96
  %v1067 = vpop.permute.xlu0 %1066
  %1068 = vrot.lane.b32.xlu0 %v1037, 96
  %v1069 = vpop.permute.xlu0 %1068
  %v1074 = vmul.f32 %v1054, %v1063
  %v1075 = vmul.f32 %v1055, %v1065
  %v1076 = vmul.f32 %v1056, %v1067
  %v1077 = vmul.f32 %v1057, %v1069
  %v1078 = vadd.f32 %v1050, %v1074
  %v1079 = vadd.f32 %v1051, %v1075
  %v1080 = vadd.f32 %v1052, %v1076
  %v1081 = vadd.f32 %v1053, %v1077
  %1086 = vrot.lane.b32.xlu0 %v1078, 96
  %v1087 = vpop.permute.xlu0 %1086
  %1088 = vrot.lane.b32.xlu0 %v1079, 96
  %v1089 = vpop.permute.xlu0 %1088
  %1090 = vrot.lane.b32.xlu0 %v1080, 96
  %v1091 = vpop.permute.xlu0 %1090
  %1092 = vrot.lane.b32.xlu0 %v1081, 96
  %v1093 = vpop.permute.xlu0 %1092
  %1098 = vst.msk [vmem:[#allocation2] sm:$0xff] %vm168, %v1087
  %1099 = vst.msk [vmem:[#allocation2 + $0x8] sm:$0xff] %vm168, %v1089
  %1100 = vst.msk [vmem:[#allocation2 + $0x10] sm:$0xff] %vm168, %v1091
  %1101 = vst.msk [vmem:[#allocation2 + $0x18] sm:$0xff] %vm168, %v1093
  %v1102 = vld [vmem:[%s6] sm:$0xff]
  %v1103 = vld [vmem:[%s6 + $0x8] sm:$0xff]
  %v1104 = vld [vmem:[%s6 + $0x10] sm:$0xff]
  %v1105 = vld [vmem:[%s6 + $0x18] sm:$0xff]
  %v1106 = vld [vmem:[%s6 + $0x20] sm:$0xff]
  %v1107 = vld [vmem:[%s6 + $0x28] sm:$0xff]
  %v1108 = vld [vmem:[%s6 + $0x30] sm:$0xff]
  %v1109 = vld [vmem:[%s6 + $0x38] sm:$0xff]
  %v1110 = vld [vmem:[%s6 + $0x40] sm:$0xff]
  %v1111 = vld [vmem:[%s6 + $0x48] sm:$0xff]
  %v1112 = vld [vmem:[%s6 + $0x50] sm:$0xff]
  %v1113 = vld [vmem:[%s6 + $0x58] sm:$0xff]
  %v1114 = vld [vmem:[%s6 + $0x60] sm:$0xff]
  %v1115 = vld [vmem:[%s6 + $0x68] sm:$0xff]
  %v1116 = vld [vmem:[%s6 + $0x70] sm:$0xff]
  %v1117 = vld [vmem:[%s6 + $0x78] sm:$0xff]
  %v1118 = vld [vmem:[%s6 + $0x80] sm:$0xff]
  %v1119 = vld [vmem:[%s6 + $0x88] sm:$0xff]
  %v1120 = vld [vmem:[%s6 + $0x90] sm:$0xff]
  %v1121 = vld [vmem:[%s6 + $0x98] sm:$0xff]
  %v1122 = vld [vmem:[%s6 + $0xa0] sm:$0xff]
  %v1123 = vld [vmem:[%s6 + $0xa8] sm:$0xff]
  %v1124 = vld [vmem:[%s6 + $0xb0] sm:$0xff]
  %v1125 = vld [vmem:[%s6 + $0xb8] sm:$0xff]
  %v1126 = vld [vmem:[%s6 + $0xc0] sm:$0xff]
  %v1127 = vld [vmem:[%s6 + $0xc8] sm:$0xff]
  %v1128 = vld [vmem:[%s6 + $0xd0] sm:$0xff]
  %v1129 = vld [vmem:[%s6 + $0xd8] sm:$0xff]
  %v1130 = vld [vmem:[%s6 + $0xe0] sm:$0xff]
  %v1131 = vld [vmem:[%s6 + $0xe8] sm:$0xff]
  %v1132 = vld [vmem:[%s6 + $0xf0] sm:$0xff]
  %v1133 = vld [vmem:[%s6 + $0xf8] sm:$0xff]
  %v1134 = vld [vmem:[%s6 + $0x100] sm:$0xff]
  %v1135 = vld [vmem:[%s6 + $0x108] sm:$0xff]
  %v1136 = vld [vmem:[%s6 + $0x110] sm:$0xff]
  %v1137 = vld [vmem:[%s6 + $0x118] sm:$0xff]
  %v1138 = vld [vmem:[%s6 + $0x120] sm:$0xff]
  %v1139 = vld [vmem:[%s6 + $0x128] sm:$0xff]
  %v1140 = vld [vmem:[%s6 + $0x130] sm:$0xff]
  %v1141 = vld [vmem:[%s6 + $0x138] sm:$0xff]
  %v1142 = vld [vmem:[%s6 + $0x140] sm:$0xff]
  %v1143 = vld [vmem:[%s6 + $0x148] sm:$0xff]
  %v1144 = vld [vmem:[%s6 + $0x150] sm:$0xff]
  %v1145 = vld [vmem:[%s6 + $0x158] sm:$0xff]
  %v1146 = vld [vmem:[%s6 + $0x160] sm:$0xff]
  %v1147 = vld [vmem:[%s6 + $0x168] sm:$0xff]
  %v1148 = vld [vmem:[%s6 + $0x170] sm:$0xff]
  %v1149 = vld [vmem:[%s6 + $0x178] sm:$0xff]
  %v1150 = vld [vmem:[%s7] sm:$0x1]
  %v1151 = vld [vmem:[%s8] sm:$0xff]
  %v1152 = vld [vmem:[%s8 + $0x8] sm:$0xff]
  %v1153 = vld [vmem:[%s8 + $0x10] sm:$0xff]
  %v1154 = vld [vmem:[%s8 + $0x18] sm:$0xff]
  %v1155 = vld [vmem:[%s8 + $0x20] sm:$0xff]
  %v1156 = vld [vmem:[%s8 + $0x28] sm:$0xff]
  %v1157 = vld [vmem:[%s8 + $0x30] sm:$0xff]
  %v1158 = vld [vmem:[%s8 + $0x38] sm:$0xff]
  %v1159 = vld [vmem:[%s8 + $0x40] sm:$0xff]
  %v1160 = vld [vmem:[%s8 + $0x48] sm:$0xff]
  %v1161 = vld [vmem:[%s8 + $0x50] sm:$0xff]
  %v1162 = vld [vmem:[%s8 + $0x58] sm:$0xff]
  %s1163 = scalar_lea.vmem [#allocation2], 32
  %v1164 = vld [vmem:[%s1163] sm:$0xff]
  %v1165 = vld [vmem:[%s1163 + $0x8] sm:$0xff]
  %v1166 = vld [vmem:[%s1163 + $0x10] sm:$0xff]
  %v1167 = vld [vmem:[%s1163 + $0x18] sm:$0xff]
  %1168 = vst.msk [vmem:[#allocation3] sm:$0xff] %vm168, %v1087
  %1169 = vst.msk [vmem:[#allocation3 + $0x8] sm:$0xff] %vm168, %v1089
  %1170 = vst.msk [vmem:[#allocation3 + $0x10] sm:$0xff] %vm168, %v1091
  %1171 = vst.msk [vmem:[#allocation3 + $0x18] sm:$0xff] %vm168, %v1093
  %1176 = vrot.lane.b32.xlu0 %v1164, 32
  %v1177 = vpop.permute.xlu0 %1176
  %1178 = vrot.lane.b32.xlu0 %v1165, 32
  %v1179 = vpop.permute.xlu0 %1178
  %1180 = vrot.lane.b32.xlu0 %v1166, 32
  %v1181 = vpop.permute.xlu0 %1180
  %1182 = vrot.lane.b32.xlu0 %v1167, 32
  %v1183 = vpop.permute.xlu0 %1182
  %vm1188 = vcmask 523520
  %1189 = vst.msk [vmem:[#allocation3] sm:$0xff] %vm1188, %v1177
  %1190 = vst.msk [vmem:[#allocation3 + $0x8] sm:$0xff] %vm1188, %v1179
  %1191 = vst.msk [vmem:[#allocation3 + $0x10] sm:$0xff] %vm1188, %v1181
  %1192 = vst.msk [vmem:[#allocation3 + $0x18] sm:$0xff] %vm1188, %v1183
  %v1193 = vld [vmem:[#allocation3] sm:$0xff]
  %v1194 = vld [vmem:[#allocation3 + $0x8] sm:$0xff]
  %v1195 = vld [vmem:[#allocation3 + $0x10] sm:$0xff]
  %v1196 = vld [vmem:[#allocation3 + $0x18] sm:$0xff]
  %1197 = vmatprep.subr.mxu0 0.0
  %1198 = vmatpush1.msra.mxu0 %v1193
  %1199 = vmatprep.subr.mxu0 0.0
  %1200 = vmatpush1.msra.mxu0 %v1194
  %1201 = vmatprep.subr.mxu0 0.0
  %1202 = vmatpush1.msra.mxu0 %v1195
  %1203 = vmatprep.subr.mxu0 0.0
  %1204 = vmatpush1.msra.mxu0 %v1196
  %1205 = vmatprep.subr.mxu0 0.0
  %1206 = vmatpush1.msra.mxu0 0.0
  %1207 = vmatprep.subr.mxu0 0.0
  %1208 = vmatpush1.msra.mxu0 0.0
  %1209 = vmatprep.subr.mxu0 0.0
  %1210 = vmatpush1.msra.mxu0 0.0
  %1211 = vmatprep.subr.mxu0 0.0
  %1212 = vmatpush1.msra.mxu0 0.0
  %1213 = vmatprep.subr.mxu0 0.0
  %1214 = vmatpush1.msra.mxu0 0.0
  %1215 = vmatprep.subr.mxu0 0.0
  %1216 = vmatpush1.msra.mxu0 0.0
  %1217 = vmatprep.subr.mxu0 0.0
  %1218 = vmatpush1.msra.mxu0 0.0
  %1219 = vmatprep.subr.mxu0 0.0
  %1220 = vmatpush1.msra.mxu0 0.0
  %1221 = vmatprep.subr.mxu0 0.0
  %1222 = vmatpush1.msra.mxu0 0.0
  %1223 = vmatprep.subr.mxu0 0.0
  %1224 = vmatpush1.msra.mxu0 0.0
  %1225 = vmatprep.subr.mxu0 0.0
  %1226 = vmatpush1.msra.mxu0 0.0
  %1227 = vmatprep.subr.mxu0 0.0
  %1228 = vmatpush1.msra.mxu0 0.0
  %1229 = vmatprep.subr.mxu0 0.0
  %1230 = vmatpush1.msra.mxu0 0.0
  %1231 = vmatprep.subr.mxu0 0.0
  %1232 = vmatpush1.msra.mxu0 0.0
  %1233 = vmatprep.subr.mxu0 0.0
  %1234 = vmatpush1.msra.mxu0 0.0
  %1235 = vmatprep.subr.mxu0 0.0
  %1236 = vmatpush1.msra.mxu0 0.0
  %1237 = vmatprep.subr.mxu0 0.0
  %1238 = vmatpush1.msra.mxu0 0.0
  %1239 = vmatprep.subr.mxu0 0.0
  %1240 = vmatpush1.msra.mxu0 0.0
  %1241 = vmatprep.subr.mxu0 0.0
  %1242 = vmatpush1.msra.mxu0 0.0
  %1243 = vmatprep.subr.mxu0 0.0
  %1244 = vmatpush1.msra.mxu0 0.0
  %1245 = vmatprep.subr.mxu0 0.0
  %1246 = vmatpush1.msra.mxu0 0.0
  %1247 = vmatprep.subr.mxu0 0.0
  %1248 = vmatpush1.msra.mxu0 0.0
  %1249 = vmatprep.subr.mxu0 0.0
  %1250 = vmatpush1.msra.mxu0 0.0
  %1251 = vmatprep.subr.mxu0 0.0
  %1252 = vmatpush1.msra.mxu0 0.0
  %1253 = vmatprep.subr.mxu0 0.0
  %1254 = vmatpush1.msra.mxu0 0.0
  %1255 = vmatprep.subr.mxu0 0.0
  %1256 = vmatpush1.msra.mxu0 0.0
  %1257 = vmatprep.subr.mxu0 0.0
  %1258 = vmatpush1.msra.mxu0 0.0
  %1259 = vmatprep.subr.mxu0 0.0
  %1260 = vmatpush1.msra.mxu0 0.0
  %1261 = vmatprep.mubr.f32.mxu0 0.0
  %1262 = vmatmul.mubr.f32.gmra.mrb[0].mxu0 %v170
  %v1263 = vpop.f32.mrb[0].mxu0
  %v1264 = vadd.f32 0.0, %v1263
  %v1265 = vpop.f32.mrb[0].mxu0
  %1266 = vmatprep.mubr.f32.mxu0 0.0
  %1267 = vmatmul.mubr.f32.gmra.mrb[0].mxu0 %v173
  %v1268 = vpop.f32.mrb[0].mxu0
  %v1269 = vadd.f32 0.0, %v1268
  %v1270 = vpop.f32.mrb[0].mxu0
  %1271 = vmatprep.mubr.f32.mxu0 0.0
  %1272 = vmatmul.mubr.f32.gmra.mrb[0].mxu0 %v176
  %v1273 = vpop.f32.mrb[0].mxu0
  %v1274 = vadd.f32 0.0, %v1273
  %v1275 = vpop.f32.mrb[0].mxu0
  %1276 = vmatprep.mubr.f32.mxu0 0.0
  %1277 = vmatmul.mubr.f32.gmra.mrb[0].mxu0 %v179
  %v1278 = vpop.f32.mrb[0].mxu0
  %v1279 = vadd.f32 0.0, %v1278
  %v1280 = vpop.f32.mrb[0].mxu0
  %1281 = vmatprep.mubr.f32.mxu0 0.0
  %1282 = vmatmul.mubr.f32.gmra.mrb[0].mxu0 %v182
  %v1283 = vpop.f32.mrb[0].mxu0
  %v1284 = vadd.f32 0.0, %v1283
  %v1285 = vpop.f32.mrb[0].mxu0
  %1286 = vmatprep.mubr.f32.mxu0 0.0
  %1287 = vmatmul.mubr.f32.gmra.mrb[0].mxu0 %v185
  %v1288 = vpop.f32.mrb[0].mxu0
  %v1289 = vadd.f32 0.0, %v1288
  %v1290 = vpop.f32.mrb[0].mxu0
  %1291 = vmatprep.mubr.f32.mxu0 0.0
  %1292 = vmatmul.mubr.f32.gmra.mrb[0].mxu0 %v188
  %v1293 = vpop.f32.mrb[0].mxu0
  %v1294 = vadd.f32 0.0, %v1293
  %v1295 = vpop.f32.mrb[0].mxu0
  %1296 = vmatprep.mubr.f32.mxu0 0.0
  %1297 = vmatmul.mubr.f32.gmra.mrb[0].mxu0 %v191
  %v1298 = vpop.f32.mrb[0].mxu0
  %v1299 = vadd.f32 0.0, %v1298
  %v1300 = vpop.f32.mrb[0].mxu0
  %1301 = vmatprep.mubr.f32.mxu0 0.0
  %1302 = vmatmul.mubr.f32.gmra.mrb[0].mxu0 %v194
  %v1303 = vpop.f32.mrb[0].mxu0
  %v1304 = vadd.f32 0.0, %v1303
  %v1305 = vpop.f32.mrb[0].mxu0
  %1306 = vmatprep.mubr.f32.mxu0 0.0
  %1307 = vmatmul.mubr.f32.gmra.mrb[0].mxu0 %v197
  %v1308 = vpop.f32.mrb[0].mxu0
  %v1309 = vadd.f32 0.0, %v1308
  %v1310 = vpop.f32.mrb[0].mxu0
  %1311 = vmatprep.mubr.f32.mxu0 0.0
  %1312 = vmatmul.mubr.f32.gmra.mrb[0].mxu0 %v200
  %v1313 = vpop.f32.mrb[0].mxu0
  %v1314 = vadd.f32 0.0, %v1313
  %v1315 = vpop.f32.mrb[0].mxu0
  %1316 = vmatprep.mubr.f32.mxu0 0.0
  %1317 = vmatmul.mubr.f32.gmra.mrb[0].mxu0 %v203
  %v1318 = vpop.f32.mrb[0].mxu0
  %v1319 = vadd.f32 0.0, %v1318
  %v1320 = vpop.f32.mrb[0].mxu0
  %1321 = vdwg.mxu0
  %1322 = vst [vmem:[#allocation4] sm:$0xff] %v1264
  %1323 = vst [vmem:[#allocation4 + $0x18] sm:$0xff] %v1269
  %1324 = vst [vmem:[#allocation4 + $0x30] sm:$0xff] %v1274
  %1325 = vst [vmem:[#allocation4 + $0x48] sm:$0xff] %v1279
  %1326 = vst [vmem:[#allocation4 + $0x8] sm:$0xff] %v1284
  %1327 = vst [vmem:[#allocation4 + $0x20] sm:$0xff] %v1289
  %1328 = vst [vmem:[#allocation4 + $0x38] sm:$0xff] %v1294
  %1329 = vst [vmem:[#allocation4 + $0x50] sm:$0xff] %v1299
  %1330 = vst [vmem:[#allocation4 + $0x10] sm:$0xff] %v1304
  %1331 = vst [vmem:[#allocation4 + $0x28] sm:$0xff] %v1309
  %1332 = vst [vmem:[#allocation4 + $0x40] sm:$0xff] %v1314
  %1333 = vst [vmem:[#allocation4 + $0x58] sm:$0xff] %v1319
  %v1334 = vld [vmem:[#allocation4] sm:$0xff]
  %v1335 = vld [vmem:[#allocation4 + $0x8] sm:$0xff]
  %v1336 = vld [vmem:[#allocation4 + $0x10] sm:$0xff]
  %v1337 = vld [vmem:[#allocation4 + $0x18] sm:$0xff]
  %v1338 = vld [vmem:[#allocation4 + $0x20] sm:$0xff]
  %v1339 = vld [vmem:[#allocation4 + $0x28] sm:$0xff]
  %v1340 = vld [vmem:[#allocation4 + $0x30] sm:$0xff]
  %v1341 = vld [vmem:[#allocation4 + $0x38] sm:$0xff]
  %v1342 = vld [vmem:[#allocation4 + $0x40] sm:$0xff]
  %v1343 = vld [vmem:[#allocation4 + $0x48] sm:$0xff]
  %v1344 = vld [vmem:[#allocation4 + $0x50] sm:$0xff]
  %v1345 = vld [vmem:[#allocation4 + $0x58] sm:$0xff]
  %v1347 = vlaneseq
  %v1348 = vshrl.u32 %v1347, 7
  %v1349 = vsub.s32 0, %v1348
  %v1350 = vrot.slane %v1150, %v1349
  %1352 = vmatprep.subr.mxu0 0.0
  %1353 = vmatpush1.msra.mxu0 %v1102
  %1354 = vmatprep.subr.mxu0 0.0
  %1355 = vmatpush1.msra.mxu0 %v1103
  %1356 = vmatprep.subr.mxu0 0.0
  %1357 = vmatpush1.msra.mxu0 %v1104
  %1358 = vmatprep.subr.mxu0 0.0
  %1359 = vmatpush1.msra.mxu0 %v1105
  %1360 = vmatprep.subr.mxu0 0.0
  %1361 = vmatpush1.msra.mxu0 %v1106
  %1362 = vmatprep.subr.mxu0 0.0
  %1363 = vmatpush1.msra.mxu0 %v1107
  %1364 = vmatprep.subr.mxu0 0.0
  %1365 = vmatpush1.msra.mxu0 %v1108
  %1366 = vmatprep.subr.mxu0 0.0
  %1367 = vmatpush1.msra.mxu0 %v1109
  %1368 = vmatprep.subr.mxu0 0.0
  %1369 = vmatpush1.msra.mxu0 %v1110
  %1370 = vmatprep.subr.mxu0 0.0
  %1371 = vmatpush1.msra.mxu0 %v1111
  %1372 = vmatprep.subr.mxu0 0.0
  %1373 = vmatpush1.msra.mxu0 %v1112
  %1374 = vmatprep.subr.mxu0 0.0
  %1375 = vmatpush1.msra.mxu0 %v1113
  %1376 = vmatprep.subr.mxu0 0.0
  %1377 = vmatpush1.msra.mxu0 %v1114
  %1378 = vmatprep.subr.mxu0 0.0
  %1379 = vmatpush1.msra.mxu0 %v1115
  %1380 = vmatprep.subr.mxu0 0.0
  %1381 = vmatpush1.msra.mxu0 %v1116
  %1382 = vmatprep.subr.mxu0 0.0
  %1383 = vmatpush1.msra.mxu0 %v1117
  %1384 = vmatprep.subr.mxu0 0.0
  %1385 = vmatpush1.msra.mxu0 %v1118
  %1386 = vmatprep.subr.mxu0 0.0
  %1387 = vmatpush1.msra.mxu0 %v1119
  %1388 = vmatprep.subr.mxu0 0.0
  %1389 = vmatpush1.msra.mxu0 %v1120
  %1390 = vmatprep.subr.mxu0 0.0
  %1391 = vmatpush1.msra.mxu0 %v1121
  %1392 = vmatprep.subr.mxu0 0.0
  %1393 = vmatpush1.msra.mxu0 %v1122
  %1394 = vmatprep.subr.mxu0 0.0
  %1395 = vmatpush1.msra.mxu0 %v1123
  %1396 = vmatprep.subr.mxu0 0.0
  %1397 = vmatpush1.msra.mxu0 %v1124
  %1398 = vmatprep.subr.mxu0 0.0
  %1399 = vmatpush1.msra.mxu0 %v1125
  %1400 = vmatprep.subr.mxu0 0.0
  %1401 = vmatpush1.msra.mxu0 %v1126
  %1402 = vmatprep.subr.mxu0 0.0
  %1403 = vmatpush1.msra.mxu0 %v1127
  %1404 = vmatprep.subr.mxu0 0.0
  %1405 = vmatpush1.msra.mxu0 %v1128
  %1406 = vmatprep.subr.mxu0 0.0
  %1407 = vmatpush1.msra.mxu0 %v1129
  %1408 = vmatprep.subr.mxu0 0.0
  %1409 = vmatpush1.msra.mxu0 %v1130
  %1410 = vmatprep.subr.mxu0 0.0
  %1411 = vmatpush1.msra.mxu0 %v1131
  %1412 = vmatprep.subr.mxu0 0.0
  %1413 = vmatpush1.msra.mxu0 %v1132
  %1414 = vmatprep.subr.mxu0 0.0
  %1415 = vmatpush1.msra.mxu0 %v1133
  %1416 = vmatprep.mubr.f32.mxu0 %v1335
  %1417 = vmatmul.mubr.f32.gmra.mrb[0].mxu0 %v1334
  %v1418 = vpop.f32.mrb[0].mxu0
  %v1419 = vadd.f32 %v1350, %v1418
  %v1420 = vpop.f32.mrb[0].mxu0
  %1421 = vmatprep.mubr.f32.mxu0 %v1338
  %1422 = vmatmul.mubr.f32.gmra.mrb[0].mxu0 %v1337
  %v1423 = vpop.f32.mrb[0].mxu0
  %v1424 = vadd.f32 %v1350, %v1423
  %v1425 = vpop.f32.mrb[0].mxu0
  %1426 = vmatprep.mubr.f32.mxu0 %v1341
  %1427 = vmatmul.mubr.f32.gmra.mrb[0].mxu0 %v1340
  %v1428 = vpop.f32.mrb[0].mxu0
  %v1429 = vadd.f32 %v1350, %v1428
  %v1430 = vpop.f32.mrb[0].mxu0
  %1431 = vmatprep.mubr.f32.mxu0 %v1344
  %1432 = vmatmul.mubr.f32.gmra.mrb[0].mxu0 %v1343
  %v1433 = vpop.f32.mrb[0].mxu0
  %v1434 = vadd.f32 %v1350, %v1433
  %v1435 = vpop.f32.mrb[0].mxu0
  %1436 = vdwg.mxu0
  %1437 = vmatprep.subr.mxu0 0.0
  %1438 = vmatpush1.msra.mxu0 %v1134
  %1439 = vmatprep.subr.mxu0 0.0
  %1440 = vmatpush1.msra.mxu0 %v1135
  %1441 = vmatprep.subr.mxu0 0.0
  %1442 = vmatpush1.msra.mxu0 %v1136
  %1443 = vmatprep.subr.mxu0 0.0
  %1444 = vmatpush1.msra.mxu0 %v1137
  %1445 = vmatprep.subr.mxu0 0.0
  %1446 = vmatpush1.msra.mxu0 %v1138
  %1447 = vmatprep.subr.mxu0 0.0
  %1448 = vmatpush1.msra.mxu0 %v1139
  %1449 = vmatprep.subr.mxu0 0.0
  %1450 = vmatpush1.msra.mxu0 %v1140
  %1451 = vmatprep.subr.mxu0 0.0
  %1452 = vmatpush1.msra.mxu0 %v1141
  %1453 = vmatprep.subr.mxu0 0.0
  %1454 = vmatpush1.msra.mxu0 %v1142
  %1455 = vmatprep.subr.mxu0 0.0
  %1456 = vmatpush1.msra.mxu0 %v1143
  %1457 = vmatprep.subr.mxu0 0.0
  %1458 = vmatpush1.msra.mxu0 %v1144
  %1459 = vmatprep.subr.mxu0 0.0
  %1460 = vmatpush1.msra.mxu0 %v1145
  %1461 = vmatprep.subr.mxu0 0.0
  %1462 = vmatpush1.msra.mxu0 %v1146
  %1463 = vmatprep.subr.mxu0 0.0
  %1464 = vmatpush1.msra.mxu0 %v1147
  %1465 = vmatprep.subr.mxu0 0.0
  %1466 = vmatpush1.msra.mxu0 %v1148
  %1467 = vmatprep.subr.mxu0 0.0
  %1468 = vmatpush1.msra.mxu0 %v1149
  %1469 = vmatprep.subr.mxu0 0.0
  %1470 = vmatpush1.msra.mxu0 0.0
  %1471 = vmatprep.subr.mxu0 0.0
  %1472 = vmatpush1.msra.mxu0 0.0
  %1473 = vmatprep.subr.mxu0 0.0
  %1474 = vmatpush1.msra.mxu0 0.0
  %1475 = vmatprep.subr.mxu0 0.0
  %1476 = vmatpush1.msra.mxu0 0.0
  %1477 = vmatprep.subr.mxu0 0.0
  %1478 = vmatpush1.msra.mxu0 0.0
  %1479 = vmatprep.subr.mxu0 0.0
  %1480 = vmatpush1.msra.mxu0 0.0
  %1481 = vmatprep.subr.mxu0 0.0
  %1482 = vmatpush1.msra.mxu0 0.0
  %1483 = vmatprep.subr.mxu0 0.0
  %1484 = vmatpush1.msra.mxu0 0.0
  %1485 = vmatprep.subr.mxu0 0.0
  %1486 = vmatpush1.msra.mxu0 0.0
  %1487 = vmatprep.subr.mxu0 0.0
  %1488 = vmatpush1.msra.mxu0 0.0
  %1489 = vmatprep.subr.mxu0 0.0
  %1490 = vmatpush1.msra.mxu0 0.0
  %1491 = vmatprep.subr.mxu0 0.0
  %1492 = vmatpush1.msra.mxu0 0.0
  %1493 = vmatprep.subr.mxu0 0.0
  %1494 = vmatpush1.msra.mxu0 0.0
  %1495 = vmatprep.subr.mxu0 0.0
  %1496 = vmatpush1.msra.mxu0 0.0
  %1497 = vmatprep.subr.mxu0 0.0
  %1498 = vmatpush1.msra.mxu0 0.0
  %1499 = vmatprep.subr.mxu0 0.0
  %1500 = vmatpush1.msra.mxu0 0.0
  %1501 = vmatprep.mubr.f32.mxu0 0.0
  %1502 = vmatmul.mubr.f32.gmra.mrb[0].mxu0 %v1336
  %v1503 = vpop.f32.mrb[0].mxu0
  %v1504 = vadd.f32 %v1419, %v1503
  %v1505 = vpop.f32.mrb[0].mxu0
  %1506 = vmatprep.mubr.f32.mxu0 0.0
  %1507 = vmatmul.mubr.f32.gmra.mrb[0].mxu0 %v1339
  %v1508 = vpop.f32.mrb[0].mxu0
  %v1509 = vadd.f32 %v1424, %v1508
  %v1510 = vpop.f32.mrb[0].mxu0
  %1511 = vmatprep.mubr.f32.mxu0 0.0
  %1512 = vmatmul.mubr.f32.gmra.mrb[0].mxu0 %v1342
  %v1513 = vpop.f32.mrb[0].mxu0
  %v1514 = vadd.f32 %v1429, %v1513
  %v1515 = vpop.f32.mrb[0].mxu0
  %1516 = vmatprep.mubr.f32.mxu0 0.0
  %1517 = vmatmul.mubr.f32.gmra.mrb[0].mxu0 %v1345
  %v1518 = vpop.f32.mrb[0].mxu0
  %v1519 = vadd.f32 %v1434, %v1518
  %v1520 = vpop.f32.mrb[0].mxu0
  %1521 = vdwg.mxu0
  %v1522 = vxor.u32 %v1504, 2147483648
  %v1523 = vxor.u32 %v1509, 2147483648
  %v1524 = vxor.u32 %v1514, 2147483648
  %v1525 = vxor.u32 %v1519, 2147483648
  %v1526 = vmul.f32 %v1522, 1.442695
  %v1527 = vpow.pop %v1526
  %v1528 = vmul.f32 %v1523, 1.442695
  %v1529 = vpow.pop %v1528
  %v1530 = vmul.f32 %v1524, 1.442695
  %v1531 = vpow.pop %v1530
  %v1532 = vmul.f32 %v1525, 1.442695
  %v1533 = vpow.pop %v1532
  %v1534 = vadd.f32 %v1527, 1.0
  %v1535 = vadd.f32 %v1529, 1.0
  %v1536 = vadd.f32 %v1531, 1.0
  %v1537 = vadd.f32 %v1533, 1.0
  %v1538 = vrcp.pop %v1534
  %v1539 = vmul.f32 1.0, %v1538
  %v1540 = vrcp.pop %v1535
  %v1541 = vmul.f32 1.0, %v1540
  %v1542 = vrcp.pop %v1536
  %v1543 = vmul.f32 1.0, %v1542
  %v1544 = vrcp.pop %v1537
  %v1545 = vmul.f32 1.0, %v1544
  %v1546 = vmul.f32 %v1539, %v1164
  %v1547 = vmul.f32 %v1541, %v1165
  %v1548 = vmul.f32 %v1543, %v1166
  %v1549 = vmul.f32 %v1545, %v1167
  %1550 = vmatprep.subr.mxu0 0.0
  %1551 = vmatpush1.msra.mxu0 %v1546
  %1552 = vmatprep.subr.mxu0 0.0
  %1553 = vmatpush1.msra.mxu0 %v1547
  %1554 = vmatprep.subr.mxu0 0.0
  %1555 = vmatpush1.msra.mxu0 %v1548
  %1556 = vmatprep.subr.mxu0 0.0
  %1557 = vmatpush1.msra.mxu0 %v1549
  %1558 = vmatprep.subr.mxu0 0.0
  %1559 = vmatpush1.msra.mxu0 0.0
  %1560 = vmatprep.subr.mxu0 0.0
  %1561 = vmatpush1.msra.mxu0 0.0
  %1562 = vmatprep.subr.mxu0 0.0
  %1563 = vmatpush1.msra.mxu0 0.0
  %1564 = vmatprep.subr.mxu0 0.0
  %1565 = vmatpush1.msra.mxu0 0.0
  %1566 = vmatprep.subr.mxu0 0.0
  %1567 = vmatpush1.msra.mxu0 0.0
  %1568 = vmatprep.subr.mxu0 0.0
  %1569 = vmatpush1.msra.mxu0 0.0
  %1570 = vmatprep.subr.mxu0 0.0
  %1571 = vmatpush1.msra.mxu0 0.0
  %1572 = vmatprep.subr.mxu0 0.0
  %1573 = vmatpush1.msra.mxu0 0.0
  %1574 = vmatprep.subr.mxu0 0.0
  %1575 = vmatpush1.msra.mxu0 0.0
  %1576 = vmatprep.subr.mxu0 0.0
  %1577 = vmatpush1.msra.mxu0 0.0
  %1578 = vmatprep.subr.mxu0 0.0
  %1579 = vmatpush1.msra.mxu0 0.0
  %1580 = vmatprep.subr.mxu0 0.0
  %1581 = vmatpush1.msra.mxu0 0.0
  %1582 = vmatprep.subr.mxu0 0.0
  %1583 = vmatpush1.msra.mxu0 0.0
  %1584 = vmatprep.subr.mxu0 0.0
  %1585 = vmatpush1.msra.mxu0 0.0
  %1586 = vmatprep.subr.mxu0 0.0
  %1587 = vmatpush1.msra.mxu0 0.0
  %1588 = vmatprep.subr.mxu0 0.0
  %1589 = vmatpush1.msra.mxu0 0.0
  %1590 = vmatprep.subr.mxu0 0.0
  %1591 = vmatpush1.msra.mxu0 0.0
  %1592 = vmatprep.subr.mxu0 0.0
  %1593 = vmatpush1.msra.mxu0 0.0
  %1594 = vmatprep.subr.mxu0 0.0
  %1595 = vmatpush1.msra.mxu0 0.0
  %1596 = vmatprep.subr.mxu0 0.0
  %1597 = vmatpush1.msra.mxu0 0.0
  %1598 = vmatprep.subr.mxu0 0.0
  %1599 = vmatpush1.msra.mxu0 0.0
  %1600 = vmatprep.subr.mxu0 0.0
  %1601 = vmatpush1.msra.mxu0 0.0
  %1602 = vmatprep.subr.mxu0 0.0
  %1603 = vmatpush1.msra.mxu0 0.0
  %1604 = vmatprep.subr.mxu0 0.0
  %1605 = vmatpush1.msra.mxu0 0.0
  %1606 = vmatprep.subr.mxu0 0.0
  %1607 = vmatpush1.msra.mxu0 0.0
  %1608 = vmatprep.subr.mxu0 0.0
  %1609 = vmatpush1.msra.mxu0 0.0
  %1610 = vmatprep.subr.mxu0 0.0
  %1611 = vmatpush1.msra.mxu0 0.0
  %1612 = vmatprep.subr.mxu0 0.0
  %1613 = vmatpush1.msra.mxu0 0.0
  %1614 = vmatprep.mubr.f32.mxu0 0.0
  %1615 = vmatmul.mubr.f32.gmra.mrb[0].mxu0 %v170
  %v1616 = vpop.f32.mrb[0].mxu0
  %v1617 = vadd.f32 0.0, %v1616
  %v1618 = vpop.f32.mrb[0].mxu0
  %1619 = vmatprep.mubr.f32.mxu0 0.0
  %1620 = vmatmul.mubr.f32.gmra.mrb[0].mxu0 %v173
  %v1621 = vpop.f32.mrb[0].mxu0
  %v1622 = vadd.f32 0.0, %v1621
  %v1623 = vpop.f32.mrb[0].mxu0
  %1624 = vmatprep.mubr.f32.mxu0 0.0
  %1625 = vmatmul.mubr.f32.gmra.mrb[0].mxu0 %v176
  %v1626 = vpop.f32.mrb[0].mxu0
  %v1627 = vadd.f32 0.0, %v1626
  %v1628 = vpop.f32.mrb[0].mxu0
  %1629 = vmatprep.mubr.f32.mxu0 0.0
  %1630 = vmatmul.mubr.f32.gmra.mrb[0].mxu0 %v179
  %v1631 = vpop.f32.mrb[0].mxu0
  %v1632 = vadd.f32 0.0, %v1631
  %v1633 = vpop.f32.mrb[0].mxu0
  %1634 = vmatprep.mubr.f32.mxu0 0.0
  %1635 = vmatmul.mubr.f32.gmra.mrb[0].mxu0 %v182
  %v1636 = vpop.f32.mrb[0].mxu0
  %v1637 = vadd.f32 0.0, %v1636
  %v1638 = vpop.f32.mrb[0].mxu0
  %1639 = vmatprep.mubr.f32.mxu0 0.0
  %1640 = vmatmul.mubr.f32.gmra.mrb[0].mxu0 %v185
  %v1641 = vpop.f32.mrb[0].mxu0
  %v1642 = vadd.f32 0.0, %v1641
  %v1643 = vpop.f32.mrb[0].mxu0
  %1644 = vmatprep.mubr.f32.mxu0 0.0
  %1645 = vmatmul.mubr.f32.gmra.mrb[0].mxu0 %v188
  %v1646 = vpop.f32.mrb[0].mxu0
  %v1647 = vadd.f32 0.0, %v1646
  %v1648 = vpop.f32.mrb[0].mxu0
  %1649 = vmatprep.mubr.f32.mxu0 0.0
  %1650 = vmatmul.mubr.f32.gmra.mrb[0].mxu0 %v191
  %v1651 = vpop.f32.mrb[0].mxu0
  %v1652 = vadd.f32 0.0, %v1651
  %v1653 = vpop.f32.mrb[0].mxu0
  %1654 = vmatprep.mubr.f32.mxu0 0.0
  %1655 = vmatmul.mubr.f32.gmra.mrb[0].mxu0 %v194
  %v1656 = vpop.f32.mrb[0].mxu0
  %v1657 = vadd.f32 0.0, %v1656
  %v1658 = vpop.f32.mrb[0].mxu0
  %1659 = vmatprep.mubr.f32.mxu0 0.0
  %1660 = vmatmul.mubr.f32.gmra.mrb[0].mxu0 %v197
  %v1661 = vpop.f32.mrb[0].mxu0
  %v1662 = vadd.f32 0.0, %v1661
  %v1663 = vpop.f32.mrb[0].mxu0
  %1664 = vmatprep.mubr.f32.mxu0 0.0
  %1665 = vmatmul.mubr.f32.gmra.mrb[0].mxu0 %v200
  %v1666 = vpop.f32.mrb[0].mxu0
  %v1667 = vadd.f32 0.0, %v1666
  %v1668 = vpop.f32.mrb[0].mxu0
  %1669 = vmatprep.mubr.f32.mxu0 0.0
  %1670 = vmatmul.mubr.f32.gmra.mrb[0].mxu0 %v203
  %v1671 = vpop.f32.mrb[0].mxu0
  %v1672 = vadd.f32 0.0, %v1671
  %v1673 = vpop.f32.mrb[0].mxu0
  %1674 = vdwg.mxu0
  %v1676 = vsel %vm168, %v1617, 0
  %v1679 = vsel %vm168, %v1622, 0
  %v1682 = vsel %vm168, %v1627, 0
  %v1685 = vsel %vm168, %v1632, 0
  %1687 = vmatprep.subr.mxu0 0.0
  %1688 = vmatpush1.msra.mxu0 %v1151
  %1689 = vmatprep.subr.mxu0 0.0
  %1690 = vmatpush1.msra.mxu0 %v1152
  %1691 = vmatprep.subr.mxu0 0.0
  %1692 = vmatpush1.msra.mxu0 %v1153
  %1693 = vmatprep.subr.mxu0 0.0
  %1694 = vmatpush1.msra.mxu0 %v1154
  %1695 = vmatprep.subr.mxu0 0.0
  %1696 = vmatpush1.msra.mxu0 0.0
  %1697 = vmatprep.subr.mxu0 0.0
  %1698 = vmatpush1.msra.mxu0 0.0
  %1699 = vmatprep.subr.mxu0 0.0
  %1700 = vmatpush1.msra.mxu0 0.0
  %1701 = vmatprep.subr.mxu0 0.0
  %1702 = vmatpush1.msra.mxu0 0.0
  %1703 = vmatprep.subr.mxu0 0.0
  %1704 = vmatpush1.msra.mxu0 0.0
  %1705 = vmatprep.subr.mxu0 0.0
  %1706 = vmatpush1.msra.mxu0 0.0
  %1707 = vmatprep.subr.mxu0 0.0
  %1708 = vmatpush1.msra.mxu0 0.0
  %1709 = vmatprep.subr.mxu0 0.0
  %1710 = vmatpush1.msra.mxu0 0.0
  %1711 = vmatprep.subr.mxu0 0.0
  %1712 = vmatpush1.msra.mxu0 0.0
  %1713 = vmatprep.subr.mxu0 0.0
  %1714 = vmatpush1.msra.mxu0 0.0
  %1715 = vmatprep.subr.mxu0 0.0
  %1716 = vmatpush1.msra.mxu0 0.0
  %1717 = vmatprep.subr.mxu0 0.0
  %1718 = vmatpush1.msra.mxu0 0.0
  %1719 = vmatprep.subr.mxu0 0.0
  %1720 = vmatpush1.msra.mxu0 0.0
  %1721 = vmatprep.subr.mxu0 0.0
  %1722 = vmatpush1.msra.mxu0 0.0
  %1723 = vmatprep.subr.mxu0 0.0
  %1724 = vmatpush1.msra.mxu0 0.0
  %1725 = vmatprep.subr.mxu0 0.0
  %1726 = vmatpush1.msra.mxu0 0.0
  %1727 = vmatprep.subr.mxu0 0.0
  %1728 = vmatpush1.msra.mxu0 0.0
  %1729 = vmatprep.subr.mxu0 0.0
  %1730 = vmatpush1.msra.mxu0 0.0
  %1731 = vmatprep.subr.mxu0 0.0
  %1732 = vmatpush1.msra.mxu0 0.0
  %1733 = vmatprep.subr.mxu0 0.0
  %1734 = vmatpush1.msra.mxu0 0.0
  %1735 = vmatprep.subr.mxu0 0.0
  %1736 = vmatpush1.msra.mxu0 0.0
  %1737 = vmatprep.subr.mxu0 0.0
  %1738 = vmatpush1.msra.mxu0 0.0
  %1739 = vmatprep.subr.mxu0 0.0
  %1740 = vmatpush1.msra.mxu0 0.0
  %1741 = vmatprep.subr.mxu0 0.0
  %1742 = vmatpush1.msra.mxu0 0.0
  %1743 = vmatprep.subr.mxu0 0.0
  %1744 = vmatpush1.msra.mxu0 0.0
  %1745 = vmatprep.subr.mxu0 0.0
  %1746 = vmatpush1.msra.mxu0 0.0
  %1747 = vmatprep.subr.mxu0 0.0
  %1748 = vmatpush1.msra.mxu0 0.0
  %1749 = vmatprep.subr.mxu0 0.0
  %1750 = vmatpush1.msra.mxu0 0.0
  %1751 = vmatprep.mubr.f32.mxu0 0.0
  %1752 = vmatmul.mubr.f32.gmra.mrb[0].mxu0 %v1676
  %v1753 = vpop.f32.mrb[0].mxu0
  %v1754 = vadd.f32 0.0, %v1753
  %v1755 = vpop.f32.mrb[0].mxu0
  %1756 = vmatprep.mubr.f32.mxu0 0.0
  %1757 = vmatmul.mubr.f32.gmra.mrb[0].mxu0 %v1679
  %v1758 = vpop.f32.mrb[0].mxu0
  %v1759 = vadd.f32 0.0, %v1758
  %v1760 = vpop.f32.mrb[0].mxu0
  %1761 = vmatprep.mubr.f32.mxu0 0.0
  %1762 = vmatmul.mubr.f32.gmra.mrb[0].mxu0 %v1682
  %v1763 = vpop.f32.mrb[0].mxu0
  %v1764 = vadd.f32 0.0, %v1763
  %v1765 = vpop.f32.mrb[0].mxu0
  %1766 = vmatprep.mubr.f32.mxu0 0.0
  %1767 = vmatmul.mubr.f32.gmra.mrb[0].mxu0 %v1685
  %v1768 = vpop.f32.mrb[0].mxu0
  %v1769 = vadd.f32 0.0, %v1768
  %v1770 = vpop.f32.mrb[0].mxu0
  %1771 = vdwg.mxu0
  %1776 = vrot.lane.b32.xlu0 %v1754, 64
  %v1777 = vpop.permute.xlu0 %1776
  %1778 = vrot.lane.b32.xlu0 %v1759, 64
  %v1779 = vpop.permute.xlu0 %1778
  %1780 = vrot.lane.b32.xlu0 %v1764, 64
  %v1781 = vpop.permute.xlu0 %1780
  %1782 = vrot.lane.b32.xlu0 %v1769, 64
  %v1783 = vpop.permute.xlu0 %1782
  %v1788 = vadd.f32 %v1504, %v1777
  %v1789 = vadd.f32 %v1509, %v1779
  %v1790 = vadd.f32 %v1514, %v1781
  %v1791 = vadd.f32 %v1519, %v1783
  %v1793 = vsel %vm168, %v1637, 0
  %v1796 = vsel %vm168, %v1642, 0
  %v1799 = vsel %vm168, %v1647, 0
  %v1802 = vsel %vm168, %v1652, 0
  %1804 = vmatprep.subr.mxu0 0.0
  %1805 = vmatpush1.msra.mxu0 %v1155
  %1806 = vmatprep.subr.mxu0 0.0
  %1807 = vmatpush1.msra.mxu0 %v1156
  %1808 = vmatprep.subr.mxu0 0.0
  %1809 = vmatpush1.msra.mxu0 %v1157
  %1810 = vmatprep.subr.mxu0 0.0
  %1811 = vmatpush1.msra.mxu0 %v1158
  %1812 = vmatprep.subr.mxu0 0.0
  %1813 = vmatpush1.msra.mxu0 0.0
  %1814 = vmatprep.subr.mxu0 0.0
  %1815 = vmatpush1.msra.mxu0 0.0
  %1816 = vmatprep.subr.mxu0 0.0
  %1817 = vmatpush1.msra.mxu0 0.0
  %1818 = vmatprep.subr.mxu0 0.0
  %1819 = vmatpush1.msra.mxu0 0.0
  %1820 = vmatprep.subr.mxu0 0.0
  %1821 = vmatpush1.msra.mxu0 0.0
  %1822 = vmatprep.subr.mxu0 0.0
  %1823 = vmatpush1.msra.mxu0 0.0
  %1824 = vmatprep.subr.mxu0 0.0
  %1825 = vmatpush1.msra.mxu0 0.0
  %1826 = vmatprep.subr.mxu0 0.0
  %1827 = vmatpush1.msra.mxu0 0.0
  %1828 = vmatprep.subr.mxu0 0.0
  %1829 = vmatpush1.msra.mxu0 0.0
  %1830 = vmatprep.subr.mxu0 0.0
  %1831 = vmatpush1.msra.mxu0 0.0
  %1832 = vmatprep.subr.mxu0 0.0
  %1833 = vmatpush1.msra.mxu0 0.0
  %1834 = vmatprep.subr.mxu0 0.0
  %1835 = vmatpush1.msra.mxu0 0.0
  %1836 = vmatprep.subr.mxu0 0.0
  %1837 = vmatpush1.msra.mxu0 0.0
  %1838 = vmatprep.subr.mxu0 0.0
  %1839 = vmatpush1.msra.mxu0 0.0
  %1840 = vmatprep.subr.mxu0 0.0
  %1841 = vmatpush1.msra.mxu0 0.0
  %1842 = vmatprep.subr.mxu0 0.0
  %1843 = vmatpush1.msra.mxu0 0.0
  %1844 = vmatprep.subr.mxu0 0.0
  %1845 = vmatpush1.msra.mxu0 0.0
  %1846 = vmatprep.subr.mxu0 0.0
  %1847 = vmatpush1.msra.mxu0 0.0
  %1848 = vmatprep.subr.mxu0 0.0
  %1849 = vmatpush1.msra.mxu0 0.0
  %1850 = vmatprep.subr.mxu0 0.0
  %1851 = vmatpush1.msra.mxu0 0.0
  %1852 = vmatprep.subr.mxu0 0.0
  %1853 = vmatpush1.msra.mxu0 0.0
  %1854 = vmatprep.subr.mxu0 0.0
  %1855 = vmatpush1.msra.mxu0 0.0
  %1856 = vmatprep.subr.mxu0 0.0
  %1857 = vmatpush1.msra.mxu0 0.0
  %1858 = vmatprep.subr.mxu0 0.0
  %1859 = vmatpush1.msra.mxu0 0.0
  %1860 = vmatprep.subr.mxu0 0.0
  %1861 = vmatpush1.msra.mxu0 0.0
  %1862 = vmatprep.subr.mxu0 0.0
  %1863 = vmatpush1.msra.mxu0 0.0
  %1864 = vmatprep.subr.mxu0 0.0
  %1865 = vmatpush1.msra.mxu0 0.0
  %1866 = vmatprep.subr.mxu0 0.0
  %1867 = vmatpush1.msra.mxu0 0.0
  %1868 = vmatprep.mubr.f32.mxu0 0.0
  %1869 = vmatmul.mubr.f32.gmra.mrb[0].mxu0 %v1793
  %v1870 = vpop.f32.mrb[0].mxu0
  %v1871 = vadd.f32 0.0, %v1870
  %v1872 = vpop.f32.mrb[0].mxu0
  %1873 = vmatprep.mubr.f32.mxu0 0.0
  %1874 = vmatmul.mubr.f32.gmra.mrb[0].mxu0 %v1796
  %v1875 = vpop.f32.mrb[0].mxu0
  %v1876 = vadd.f32 0.0, %v1875
  %v1877 = vpop.f32.mrb[0].mxu0
  %1878 = vmatprep.mubr.f32.mxu0 0.0
  %1879 = vmatmul.mubr.f32.gmra.mrb[0].mxu0 %v1799
  %v1880 = vpop.f32.mrb[0].mxu0
  %v1881 = vadd.f32 0.0, %v1880
  %v1882 = vpop.f32.mrb[0].mxu0
  %1883 = vmatprep.mubr.f32.mxu0 0.0
  %1884 = vmatmul.mubr.f32.gmra.mrb[0].mxu0 %v1802
  %v1885 = vpop.f32.mrb[0].mxu0
  %v1886 = vadd.f32 0.0, %v1885
  %v1887 = vpop.f32.mrb[0].mxu0
  %1888 = vdwg.mxu0
  %1893 = vrot.lane.b32.xlu0 %v1871, 64
  %v1894 = vpop.permute.xlu0 %1893
  %1895 = vrot.lane.b32.xlu0 %v1876, 64
  %v1896 = vpop.permute.xlu0 %1895
  %1897 = vrot.lane.b32.xlu0 %v1881, 64
  %v1898 = vpop.permute.xlu0 %1897
  %1899 = vrot.lane.b32.xlu0 %v1886, 64
  %v1900 = vpop.permute.xlu0 %1899
  %v1905 = vadd.f32 %v1788, %v1894
  %v1906 = vadd.f32 %v1789, %v1896
  %v1907 = vadd.f32 %v1790, %v1898
  %v1908 = vadd.f32 %v1791, %v1900
  %v1910 = vsel %vm168, %v1657, 0
  %v1913 = vsel %vm168, %v1662, 0
  %v1916 = vsel %vm168, %v1667, 0
  %v1919 = vsel %vm168, %v1672, 0
  %1921 = vmatprep.subr.mxu0 0.0
  %1922 = vmatpush1.msra.mxu0 %v1159
  %1923 = vmatprep.subr.mxu0 0.0
  %1924 = vmatpush1.msra.mxu0 %v1160
  %1925 = vmatprep.subr.mxu0 0.0
  %1926 = vmatpush1.msra.mxu0 %v1161
  %1927 = vmatprep.subr.mxu0 0.0
  %1928 = vmatpush1.msra.mxu0 %v1162
  %1929 = vmatprep.subr.mxu0 0.0
  %1930 = vmatpush1.msra.mxu0 0.0
  %1931 = vmatprep.subr.mxu0 0.0
  %1932 = vmatpush1.msra.mxu0 0.0
  %1933 = vmatprep.subr.mxu0 0.0
  %1934 = vmatpush1.msra.mxu0 0.0
  %1935 = vmatprep.subr.mxu0 0.0
  %1936 = vmatpush1.msra.mxu0 0.0
  %1937 = vmatprep.subr.mxu0 0.0
  %1938 = vmatpush1.msra.mxu0 0.0
  %1939 = vmatprep.subr.mxu0 0.0
  %1940 = vmatpush1.msra.mxu0 0.0
  %1941 = vmatprep.subr.mxu0 0.0
  %1942 = vmatpush1.msra.mxu0 0.0
  %1943 = vmatprep.subr.mxu0 0.0
  %1944 = vmatpush1.msra.mxu0 0.0
  %1945 = vmatprep.subr.mxu0 0.0
  %1946 = vmatpush1.msra.mxu0 0.0
  %1947 = vmatprep.subr.mxu0 0.0
  %1948 = vmatpush1.msra.mxu0 0.0
  %1949 = vmatprep.subr.mxu0 0.0
  %1950 = vmatpush1.msra.mxu0 0.0
  %1951 = vmatprep.subr.mxu0 0.0
  %1952 = vmatpush1.msra.mxu0 0.0
  %1953 = vmatprep.subr.mxu0 0.0
  %1954 = vmatpush1.msra.mxu0 0.0
  %1955 = vmatprep.subr.mxu0 0.0
  %1956 = vmatpush1.msra.mxu0 0.0
  %1957 = vmatprep.subr.mxu0 0.0
  %1958 = vmatpush1.msra.mxu0 0.0
  %1959 = vmatprep.subr.mxu0 0.0
  %1960 = vmatpush1.msra.mxu0 0.0
  %1961 = vmatprep.subr.mxu0 0.0
  %1962 = vmatpush1.msra.mxu0 0.0
  %1963 = vmatprep.subr.mxu0 0.0
  %1964 = vmatpush1.msra.mxu0 0.0
  %1965 = vmatprep.subr.mxu0 0.0
  %1966 = vmatpush1.msra.mxu0 0.0
  %1967 = vmatprep.subr.mxu0 0.0
  %1968 = vmatpush1.msra.mxu0 0.0
  %1969 = vmatprep.subr.mxu0 0.0
  %1970 = vmatpush1.msra.mxu0 0.0
  %1971 = vmatprep.subr.mxu0 0.0
  %1972 = vmatpush1.msra.mxu0 0.0
  %1973 = vmatprep.subr.mxu0 0.0
  %1974 = vmatpush1.msra.mxu0 0.0
  %1975 = vmatprep.subr.mxu0 0.0
  %1976 = vmatpush1.msra.mxu0 0.0
  %1977 = vmatprep.subr.mxu0 0.0
  %1978 = vmatpush1.msra.mxu0 0.0
  %1979 = vmatprep.subr.mxu0 0.0
  %1980 = vmatpush1.msra.mxu0 0.0
  %1981 = vmatprep.subr.mxu0 0.0
  %1982 = vmatpush1.msra.mxu0 0.0
  %1983 = vmatprep.subr.mxu0 0.0
  %1984 = vmatpush1.msra.mxu0 0.0
  %1985 = vmatprep.mubr.f32.mxu0 0.0
  %1986 = vmatmul.mubr.f32.gmra.mrb[0].mxu0 %v1910
  %v1987 = vpop.f32.mrb[0].mxu0
  %v1988 = vadd.f32 0.0, %v1987
  %v1989 = vpop.f32.mrb[0].mxu0
  %1990 = vmatprep.mubr.f32.mxu0 0.0
  %1991 = vmatmul.mubr.f32.gmra.mrb[0].mxu0 %v1913
  %v1992 = vpop.f32.mrb[0].mxu0
  %v1993 = vadd.f32 0.0, %v1992
  %v1994 = vpop.f32.mrb[0].mxu0
  %1995 = vmatprep.mubr.f32.mxu0 0.0
  %1996 = vmatmul.mubr.f32.gmra.mrb[0].mxu0 %v1916
  %v1997 = vpop.f32.mrb[0].mxu0
  %v1998 = vadd.f32 0.0, %v1997
  %v1999 = vpop.f32.mrb[0].mxu0
  %2000 = vmatprep.mubr.f32.mxu0 0.0
  %2001 = vmatmul.mubr.f32.gmra.mrb[0].mxu0 %v1919
  %v2002 = vpop.f32.mrb[0].mxu0
  %v2003 = vadd.f32 0.0, %v2002
  %v2004 = vpop.f32.mrb[0].mxu0
  %2005 = vdwg.mxu0
  %2010 = vrot.lane.b32.xlu0 %v1988, 64
  %v2011 = vpop.permute.xlu0 %2010
  %2012 = vrot.lane.b32.xlu0 %v1993, 64
  %v2013 = vpop.permute.xlu0 %2012
  %2014 = vrot.lane.b32.xlu0 %v1998, 64
  %v2015 = vpop.permute.xlu0 %2014
  %2016 = vrot.lane.b32.xlu0 %v2003, 64
  %v2017 = vpop.permute.xlu0 %2016
  %v2022 = vadd.f32 %v1905, %v2011
  %v2023 = vadd.f32 %v1906, %v2013
  %v2024 = vadd.f32 %v1907, %v2015
  %v2025 = vadd.f32 %v1908, %v2017
  %v2026 = vtanh.pop %v2022
  %v2027 = vtanh.pop %v2023
  %v2028 = vtanh.pop %v2024
  %v2029 = vtanh.pop %v2025
  %v2030 = vmul.f32 %v1539, %v1177
  %v2031 = vmul.f32 %v1541, %v1179
  %v2032 = vmul.f32 %v1543, %v1181
  %v2033 = vmul.f32 %v1545, %v1183
  %v2034 = vsub.f32 1.0, %v1539
  %v2035 = vsub.f32 1.0, %v1541
  %v2036 = vsub.f32 1.0, %v1543
  %v2037 = vsub.f32 1.0, %v1545
  %2042 = vrot.lane.b32.xlu0 %v2026, 96
  %v2043 = vpop.permute.xlu0 %2042
  %2044 = vrot.lane.b32.xlu0 %v2027, 96
  %v2045 = vpop.permute.xlu0 %2044
  %2046 = vrot.lane.b32.xlu0 %v2028, 96
  %v2047 = vpop.permute.xlu0 %2046
  %2048 = vrot.lane.b32.xlu0 %v2029, 96
  %v2049 = vpop.permute.xlu0 %2048
  %v2054 = vmul.f32 %v2034, %v2043
  %v2055 = vmul.f32 %v2035, %v2045
  %v2056 = vmul.f32 %v2036, %v2047
  %v2057 = vmul.f32 %v2037, %v2049
  %v2058 = vadd.f32 %v2030, %v2054
  %v2059 = vadd.f32 %v2031, %v2055
  %v2060 = vadd.f32 %v2032, %v2056
  %v2061 = vadd.f32 %v2033, %v2057
  %2066 = vrot.lane.b32.xlu0 %v2058, 96
  %v2067 = vpop.permute.xlu0 %2066
  %2068 = vrot.lane.b32.xlu0 %v2059, 96
  %v2069 = vpop.permute.xlu0 %2068
  %2070 = vrot.lane.b32.xlu0 %v2060, 96
  %v2071 = vpop.permute.xlu0 %2070
  %2072 = vrot.lane.b32.xlu0 %v2061, 96
  %v2073 = vpop.permute.xlu0 %2072
  %2078 = vst.msk [vmem:[%s1163] sm:$0xff] %vm168, %v2067
  %2079 = vst.msk [vmem:[%s1163 + $0x8] sm:$0xff] %vm168, %v2069
  %2080 = vst.msk [vmem:[%s1163 + $0x10] sm:$0xff] %vm168, %v2071
  %2081 = vst.msk [vmem:[%s1163 + $0x18] sm:$0xff] %vm168, %v2073
  // Predicated region
  $region42: #{_run.1} parent=0 // pred_check
    %p2082 = pneg %p32
  $region43: #{_run.1} parent=0 // pred_check_branch
    %2084 = sbr.rel (%p2082) target = $region45
  $region44: #{_run.1} parent=0 // pred_region
    %v2085 = vld [vmem:[#allocation2] sm:$0xff]
    %v2086 = vld [vmem:[#allocation2 + $0x8] sm:$0xff]
    %v2087 = vld [vmem:[#allocation2 + $0x10] sm:$0xff]
    %v2088 = vld [vmem:[#allocation2 + $0x18] sm:$0xff]
    %v2089 = vld [vmem:[#allocation2 + $0x20] sm:$0xff]
    %v2090 = vld [vmem:[#allocation2 + $0x28] sm:$0xff]
    %v2091 = vld [vmem:[#allocation2 + $0x30] sm:$0xff]
    %v2092 = vld [vmem:[#allocation2 + $0x38] sm:$0xff]
    %2093 = vst.msk [vmem:[%s9] sm:$0xff] %vm168, %v2085
    %2094 = vst.msk [vmem:[%s9 + $0x8] sm:$0xff] %vm168, %v2086
    %2095 = vst.msk [vmem:[%s9 + $0x10] sm:$0xff] %vm168, %v2087
    %2096 = vst.msk [vmem:[%s9 + $0x18] sm:$0xff] %vm168, %v2088
    %2097 = vst.msk [vmem:[%s9 + $0x20] sm:$0xff] %vm168, %v2089
    %2098 = vst.msk [vmem:[%s9 + $0x28] sm:$0xff] %vm168, %v2090
    %2099 = vst.msk [vmem:[%s9 + $0x30] sm:$0xff] %vm168, %v2091
    %2100 = vst.msk [vmem:[%s9 + $0x38] sm:$0xff] %vm168, %v2092
  $region45: #{_run.1} parent=0 // pred_fallthru
    _
  // Predicated region
  $region46: #{_run.1} parent=0 // pred_check
    _
  $region47: #{_run.1} parent=0 // pred_check_branch
    %2102 = sbr.rel (0) target = $region49
  $region48: #{_run.1} parent=0 // pred_region
    _
  $region49: #{_run.1} parent=0 // pred_fallthru
    _
  // Predicated region
  $region50: #{_run.1} parent=0 // pred_check
    _
  $region51: #{_run.1} parent=0 // pred_check_branch
    %2104 = sbr.rel (0) target = $region53
  $region52: #{_run.1} parent=0 // pred_region
    _
  $region53: #{_run.1} parent=0 // pred_fallthru
    _

</llo_original>
